<compile_context>
chip_gen: v7x
topology: tpu7x:2x2x1
jax: 0.10.0
libtpu: 0.0.40
codegen_flags: <defaults>
</compile_context>

<pallas_src>
import functools

import jax
import jax.numpy as jnp
from jax.experimental import pallas as pl
from jax.experimental.pallas import tpu as pltpu

_HIGHEST = jax.lax.Precision.HIGHEST


def _round_up(n, m):
    return ((n + m - 1) // m) * m


def _vmem_capacity_bytes():
    """Per-core VMEM capacity, with a conservative fallback (v7x = 64 MiB)."""
    try:
        info = pltpu.get_tpu_info()
        cap = getattr(info, "vmem_capacity_bytes", None)
        if cap:
            # Clamp to sane per-TensorCore bounds in case a per-chip number is
            # ever reported.
            return int(min(max(int(cap), 16 * 1024 * 1024), 128 * 1024 * 1024))
    except Exception:
        pass
    return 64 * 1024 * 1024


def _fused_fc_sigmoid(avg, mx, w1_ref, w2_ref):
    """avg, mx: (C, 1) f32 -> sigmoid(fc(avg) + fc(mx)) as (C, 1) f32."""
    c = avg.shape[0]
    col = jax.lax.broadcasted_iota(jnp.int32, (c, 2), 1)
    pooled = jnp.where(col == 0, avg, mx)                               # (C, 2)
    w1 = w1_ref[...].astype(jnp.float32)                                # (Cr, C)
    w2 = w2_ref[...].astype(jnp.float32)                                # (C, Cr)
    h = jnp.maximum(
        jnp.dot(w1, pooled, preferred_element_type=jnp.float32,
                precision=_HIGHEST), 0.0)                               # (Cr, 2)
    out2 = jnp.dot(w2, h, preferred_element_type=jnp.float32,
                   precision=_HIGHEST)                                  # (C, 2)
    out = jnp.sum(out2, axis=-1, keepdims=True)                         # (C, 1)
    return 1.0 / (1.0 + jnp.exp(-out))                                  # sigmoid


# ----------------------------------------------------------------------------
# Single-pass kernel: whole (C, HW) slab per batch element (2x HBM traffic).
# block_shape == full array dims, so no lane padding / masking is needed.
# ----------------------------------------------------------------------------
def _single_pass_kernel(x_ref, w1_ref, w2_ref, o_ref):
    x = x_ref[0]                                        # (C, HW), native dtype
    hw = x.shape[-1]
    xf = x.astype(jnp.float32)                          # no-op for f32 inputs
    s = jnp.sum(xf, axis=-1, keepdims=True)             # (C, 1)
    m = jnp.max(xf, axis=-1, keepdims=True)             # (C, 1)
    scale = _fused_fc_sigmoid(s * (1.0 / hw), m, w1_ref, w2_ref)
    # Multiply in the input's native dtype (matches a native-dtype torch run).
    o_ref[0] = (x * scale.astype(x.dtype)).astype(o_ref.dtype)


# ----------------------------------------------------------------------------
# Two-pass kernels: pass 1 = pooling + FC + sigmoid -> (B, C, 1) scale,
#                   pass 2 = streaming scale * x.
# ----------------------------------------------------------------------------
def _pool_fc_kernel(x_ref, w1_ref, w2_ref, scale_ref, sum_acc, max_acc,
                    *, hw, tile_hw):
    t = pl.program_id(1)
    n_t = pl.num_programs(1)

    @pl.when(t == 0)
    def _init():
        sum_acc[...] = jnp.zeros_like(sum_acc)
        max_acc[...] = jnp.full_like(max_acc, -jnp.inf)

    rem = hw % tile_hw  # valid lanes of the last tile (0 => all tiles full)

    if rem == 0:
        x = x_ref[0].astype(jnp.float32)                # (C, tile_hw)
        sum_acc[...] += jnp.sum(x, axis=-1, keepdims=True)
        max_acc[...] = jnp.maximum(
            max_acc[...], jnp.max(x, axis=-1, keepdims=True))
    else:
        # Mask only on the last (ragged) tile; full tiles pay no iota/where.
        @pl.when(t < n_t - 1)
        def _full_tile():
            x = x_ref[0].astype(jnp.float32)
            sum_acc[...] += jnp.sum(x, axis=-1, keepdims=True)
            max_acc[...] = jnp.maximum(
                max_acc[...], jnp.max(x, axis=-1, keepdims=True))

        @pl.when(t == n_t - 1)
        def _tail_tile():
            x = x_ref[0].astype(jnp.float32)
            c, tw = x.shape
            lane = jax.lax.broadcasted_iota(jnp.int32, (c, tw), 1)
            valid = lane < rem
            sum_acc[...] += jnp.sum(jnp.where(valid, x, 0.0),
                                    axis=-1, keepdims=True)
            max_acc[...] = jnp.maximum(
                max_acc[...],
                jnp.max(jnp.where(valid, x, -jnp.inf), axis=-1, keepdims=True))

    @pl.when(t == n_t - 1)
    def _finalize():
        avg = sum_acc[...] * (1.0 / hw)
        scale = _fused_fc_sigmoid(avg, max_acc[...], w1_ref, w2_ref)
        scale_ref[0] = scale.astype(scale_ref.dtype)


def _scale_kernel(x_ref, s_ref, o_ref):
    x = x_ref[0]                                        # (C, tile_hw)
    scale = s_ref[0].astype(x.dtype)                    # (C, 1)
    # Out-of-bounds lanes of the ragged last block are dropped on writeback.
    o_ref[0] = (x * scale).astype(o_ref.dtype)


# ----------------------------------------------------------------------------
# Wrapper
# ----------------------------------------------------------------------------
def channel_attention(x, w1, w2, *, force_two_pass=False, tile_hw=None):
    """x: (B, C, H, W) NCHW (matching PyTorch). w1: (Cr, C), w2: (C, Cr)."""
    B, C, H, W = x.shape
    HW = H * W
    Cr = w1.shape[0]
    itemsize = jnp.dtype(x.dtype).itemsize

    vmem_cap = _vmem_capacity_bytes()
    vmem_limit = min(int(0.9 * vmem_cap), 128 * 1024 * 1024)
    budget = int(0.75 * vmem_cap)

    x2 = x.reshape(B, C, HW)  # free reshape; no pad, no copy

    # Per-grid-step VMEM footprint of the single-pass path (dtype-aware):
    #   double-buffered input + output slabs, one native-dtype product temp,
    #   plus an f32 cast slab for the pooling reduction when dtype < f32.
    c_pad = _round_up(C, 8)
    hw128 = _round_up(HW, 128)
    slab_native = c_pad * hw128 * itemsize
    slab_f32 = c_pad * hw128 * 4
    single_pass_bytes = (4 * slab_native + slab_native
                         + (slab_f32 if itemsize < 4 else 0))
    use_two_pass = force_two_pass or single_pass_bytes > budget

    if not use_two_pass:
        out = pl.pallas_call(
            _single_pass_kernel,
            out_shape=jax.ShapeDtypeStruct((B, C, HW), x.dtype),
            grid=(B,),
            in_specs=[
                pl.BlockSpec((1, C, HW), lambda b: (b, 0, 0)),
                pl.BlockSpec((Cr, C), lambda b: (0, 0)),
                pl.BlockSpec((C, Cr), lambda b: (0, 0)),
            ],
            out_specs=pl.BlockSpec((1, C, HW), lambda b: (b, 0, 0)),
            compiler_params=pltpu.CompilerParams(
                dimension_semantics=("parallel",),
                vmem_limit_bytes=vmem_limit),
        )(x2, w1, w2)
        return out.reshape(B, C, H, W)

    # --- two-pass path (large C*HW, small VMEM, or forced) ---
    if tile_hw is None:
        # Pass-1 (read-only pooling): 512-1024 lanes already ~HBM roofline.
        tile_pool = min(hw128, 1024)
        # Pass-2 (in+out streaming): as lane-dense as the budget allows,
        # floored at 512 lanes, capped to keep a few pipeline steps.
        max_tile = (budget // (4 * c_pad * itemsize)) // 128 * 128
        tile_scale = min(hw128, max(512, min(max_tile, 2048)))
    else:
        tt = min(hw128, max(128, (int(tile_hw) // 128) * 128))
        tile_pool = tile_scale = tt

    n_pool = pl.cdiv(HW, tile_pool)
    n_scale = pl.cdiv(HW, tile_scale)

    pool_kernel = functools.partial(_pool_fc_kernel, hw=HW, tile_hw=tile_pool)
    scale = pl.pallas_call(
        pool_kernel,
        out_shape=jax.ShapeDtypeStruct((B, C, 1), jnp.float32),
        grid=(B, n_pool),
        in_specs=[
            pl.BlockSpec((1, C, tile_pool), lambda b, t: (b, 0, t)),
            pl.BlockSpec((Cr, C), lambda b, t: (0, 0)),
            pl.BlockSpec((C, Cr), lambda b, t: (0, 0)),
        ],
        out_specs=pl.BlockSpec((1, C, 1), lambda b, t: (b, 0, 0)),
        scratch_shapes=[pltpu.VMEM((C, 1), jnp.float32),
                        pltpu.VMEM((C, 1), jnp.float32)],
        compiler_params=pltpu.CompilerParams(
            dimension_semantics=("parallel", "arbitrary"),
            vmem_limit_bytes=vmem_limit),
    )(x2, w1, w2)

    out = pl.pallas_call(
        _scale_kernel,
        out_shape=jax.ShapeDtypeStruct((B, C, HW), x.dtype),
        grid=(B, n_scale),
        in_specs=[
            pl.BlockSpec((1, C, tile_scale), lambda b, t: (b, 0, t)),
            pl.BlockSpec((1, C, 1), lambda b, t: (b, 0, 0)),
        ],
        out_specs=pl.BlockSpec((1, C, tile_scale), lambda b, t: (b, 0, t)),
        compiler_params=pltpu.CompilerParams(
            dimension_semantics=("parallel", "parallel"),
            vmem_limit_bytes=vmem_limit),
    )(x2, scale)
    return out.reshape(B, C, H, W)


def channel_attention_ref(x, w1, w2):
    """Pure-JAX reference (mirrors the PyTorch forward exactly)."""
    avg = jnp.mean(x, axis=(2, 3))                             # (B, C)
    mx = jnp.max(x, axis=(2, 3))                               # (B, C)

    def fc(v):  # v: (B, C)
        h = jnp.maximum(jnp.dot(v, w1.T, precision=_HIGHEST), 0.0)  # (B, Cr)
        return jnp.dot(h, w2.T, precision=_HIGHEST)                 # (B, C)

    scale = jax.nn.sigmoid(fc(avg) + fc(mx))                   # (B, C)
    return scale[:, :, None, None] * x


if __name__ == "__main__":
    B, C, H, W = 2, 32, 16, 16          # in_channels=32 -> hidden = 32 // 8 = 4
    Cr = C // 8

    key = jax.random.PRNGKey(0)
    kx, k1, k2 = jax.random.split(key, 3)
    x = jax.random.normal(kx, (B, C, H, W), dtype=jnp.float32)
    # Conv2d(in, out, 1, bias=False) weights, squeezed from (out, in, 1, 1).
    w1 = jax.random.normal(k1, (Cr, C), dtype=jnp.float32) * 0.1
    w2 = jax.random.normal(k2, (C, Cr), dtype=jnp.float32) * 0.1

    y_ref = channel_attention_ref(x, w1, w2)

    # Auto path (single-pass for this small shape).
    y = jax.block_until_ready(channel_attention(x, w1, w2))
    assert y.shape == (B, C, H, W)
    assert jnp.allclose(y, y_ref, atol=2e-5, rtol=2e-5)

    # Forced two-pass path (exercises HW-tiled accumulation + streaming scale).
    y2 = jax.block_until_ready(
        channel_attention(x, w1, w2, force_two_pass=True, tile_hw=128))
    assert jnp.allclose(y2, y_ref, atol=2e-5, rtol=2e-5)

    # Non-128-multiple spatial size: exercises full-dim blocks (single-pass)
    # and the masked ragged-tail tile (two-pass) with NO wrapper pad/slice.
    xp = jax.random.normal(kx, (B, C, 15, 15), dtype=jnp.float32)
    yp_ref = channel_attention_ref(xp, w1, w2)
    yp = jax.block_until_ready(channel_attention(xp, w1, w2))
    assert jnp.allclose(yp, yp_ref, atol=2e-5, rtol=2e-5)
    yp2 = jax.block_until_ready(
        channel_attention(xp, w1, w2, force_two_pass=True, tile_hw=128))
    assert jnp.allclose(yp2, yp_ref, atol=2e-5, rtol=2e-5)

    print("KERNEL_OK")
</pallas_src>

<mosaic_0001>
module attributes {stable_mosaic.version = 11 : i64} {
  func.func @_single_pass_kernel(%arg0: i32, %arg1: memref<1x32x256xf32, #tpu.memory_space<vmem>>, %arg2: memref<4x32xf32, #tpu.memory_space<vmem>>, %arg3: memref<32x4xf32, #tpu.memory_space<vmem>>, %arg4: memref<1x32x256xf32, #tpu.memory_space<vmem>>) attributes {dimension_semantics = [#tpu.dimension_semantics<parallel>], iteration_bounds = array<i64: 2>, scalar_prefetch = 0 : i64, scratch_operands = 0 : i64, tpu.core_type = #tpu.core_type<tc>, window_params = [{transform_indices = @transform_0, window_bounds = array<i64: 1, 32, 256>}, {pipeline_mode = #tpu.pipeline_mode<synchronous>, transform_indices = @transform_1, window_bounds = array<i64: 4, 32>}, {pipeline_mode = #tpu.pipeline_mode<synchronous>, transform_indices = @transform_2, window_bounds = array<i64: 32, 4>}, {transform_indices = @transform_3, window_bounds = array<i64: 1, 32, 256>}]} {
    %c0 = arith.constant 0 : index
    %c0_0 = arith.constant 0 : index
    %c0_1 = arith.constant 0 : index
    %0 = vector.load %arg1[%c0, %c0_0, %c0_1] : memref<1x32x256xf32, #tpu.memory_space<vmem>>, vector<1x32x256xf32>
    %1 = vector.shape_cast %0 : vector<1x32x256xf32> to vector<32x256xf32>
    %cst = arith.constant dense<0.000000e+00> : vector<32xf32>
    %2 = vector.multi_reduction <add>, %1, %cst [1] : vector<32x256xf32> to vector<32xf32>
    %3 = vector.shape_cast %2 : vector<32xf32> to vector<32x1xf32>
    %cst_2 = arith.constant dense<0xFF800000> : vector<32xf32>
    %4 = vector.multi_reduction <maximumf>, %1, %cst_2 [1] : vector<32x256xf32> to vector<32xf32>
    %5 = vector.shape_cast %4 : vector<32xf32> to vector<32x1xf32>
    %cst_3 = arith.constant 3.906250e-03 : f32
    %6 = vector.broadcast %cst_3 : f32 to vector<32x1xf32>
    %7 = arith.mulf %3, %6 : vector<32x1xf32>
    %8 = tpu.iota {dimensions = array<i32: 1>} : vector<32x2xi32>
    %c0_i32 = arith.constant 0 : i32
    %9 = vector.broadcast %c0_i32 : i32 to vector<32x2xi32>
    %10 = arith.cmpi eq, %8, %9 : vector<32x2xi32>
    %11 = vector.shape_cast %7 : vector<32x1xf32> to vector<32x1xf32>
    %12 = vector.broadcast %11 : vector<32x1xf32> to vector<32x2xf32>
    %13 = vector.shape_cast %5 : vector<32x1xf32> to vector<32x1xf32>
    %14 = vector.broadcast %13 : vector<32x1xf32> to vector<32x2xf32>
    %15 = arith.select %10, %12, %14 : vector<32x2xi1>, vector<32x2xf32>
    %c0_4 = arith.constant 0 : index
    %c0_5 = arith.constant 0 : index
    %16 = vector.load %arg2[%c0_4, %c0_5] : memref<4x32xf32, #tpu.memory_space<vmem>>, vector<4x32xf32>
    %c0_6 = arith.constant 0 : index
    %c0_7 = arith.constant 0 : index
    %17 = vector.load %arg3[%c0_6, %c0_7] : memref<32x4xf32, #tpu.memory_space<vmem>>, vector<32x4xf32>
    %cst_8 = arith.constant dense<0.000000e+00> : vector<4x2xf32>
    %18 = tpu.matmul %16, %15, %cst_8 {dimension_numbers = #tpu.dot_dimension_numbers<[1], [0], [0], [1], [0, 0, 1, 1], [], []>, precision = #tpu.contract_precision<fp32>} : vector<4x32xf32>, vector<32x2xf32>, vector<4x2xf32> -> vector<4x2xf32>
    %cst_9 = arith.constant 0.000000e+00 : f32
    %19 = vector.broadcast %cst_9 : f32 to vector<4x2xf32>
    %20 = arith.maximumf %18, %19 : vector<4x2xf32>
    %cst_10 = arith.constant dense<0.000000e+00> : vector<32x2xf32>
    %21 = tpu.matmul %17, %20, %cst_10 {dimension_numbers = #tpu.dot_dimension_numbers<[1], [0], [0], [1], [0, 0, 1, 1], [], []>, precision = #tpu.contract_precision<fp32>} : vector<32x4xf32>, vector<4x2xf32>, vector<32x2xf32> -> vector<32x2xf32>
    %cst_11 = arith.constant dense<0.000000e+00> : vector<32xf32>
    %22 = vector.multi_reduction <add>, %21, %cst_11 [1] : vector<32x2xf32> to vector<32xf32>
    %23 = vector.shape_cast %22 : vector<32xf32> to vector<32x1xf32>
    %cst_12 = arith.constant 0.000000e+00 : f32
    %24 = vector.broadcast %cst_12 : f32 to vector<32x1xf32>
    %25 = arith.subf %24, %23 : vector<32x1xf32>
    %26 = math.exp %25 : vector<32x1xf32>
    %cst_13 = arith.constant 1.000000e+00 : f32
    %27 = vector.broadcast %cst_13 : f32 to vector<32x1xf32>
    %28 = arith.addf %27, %26 : vector<32x1xf32>
    %cst_14 = arith.constant 1.000000e+00 : f32
    %29 = vector.broadcast %cst_14 : f32 to vector<32x1xf32>
    %30 = arith.divf %29, %28 : vector<32x1xf32>
    %31 = vector.broadcast %30 : vector<32x1xf32> to vector<32x256xf32>
    %32 = arith.mulf %1, %31 : vector<32x256xf32>
    %c0_15 = arith.constant 0 : index
    %c0_16 = arith.constant 0 : index
    %c0_17 = arith.constant 0 : index
    %33 = vector.load %arg4[%c0_15, %c0_16, %c0_17] : memref<1x32x256xf32, #tpu.memory_space<vmem>>, vector<1x32x256xf32>
    %34 = vector.shape_cast %33 : vector<1x32x256xf32> to vector<32x256xf32>
    %35 = vector.shape_cast %32 : vector<32x256xf32> to vector<1x32x256xf32>
    tpu.vector_store %arg4[%c0_15, %c0_16, %c0_17], %35 {strides = array<i32>} : memref<1x32x256xf32, #tpu.memory_space<vmem>>, vector<1x32x256xf32>,
    return
  }
  func.func @transform_0(%arg0: i32) -> (i32, i32, i32) {
    %c0_i32 = arith.constant 0 : i32
    %c0_i32_0 = arith.constant 0 : i32
    %c0_i32_1 = arith.constant 0 : i32
    return %arg0, %c0_i32, %c0_i32_0 : i32, i32, i32
  }
  func.func @transform_1(%arg0: i32) -> (i32, i32) {
    %c0_i32 = arith.constant 0 : i32
    %c0_i32_0 = arith.constant 0 : i32
    %c0_i32_1 = arith.constant 0 : i32
    return %c0_i32, %c0_i32_0 : i32, i32
  }
  func.func @transform_2(%arg0: i32) -> (i32, i32) {
    %c0_i32 = arith.constant 0 : i32
    %c0_i32_0 = arith.constant 0 : i32
    %c0_i32_1 = arith.constant 0 : i32
    return %c0_i32, %c0_i32_0 : i32, i32
  }
  func.func @transform_3(%arg0: i32) -> (i32, i32, i32) {
    %c0_i32 = arith.constant 0 : i32
    %c0_i32_0 = arith.constant 0 : i32
    %c0_i32_1 = arith.constant 0 : i32
    return %arg0, %c0_i32, %c0_i32_0 : i32, i32, i32
  }
}

</mosaic_0001>

<llo_original>
// kernel: tpu_custom_call.1
$region0: #{tpu_custom_call.1}
  #allocation0 [shape = 'u32[]', space=smem, size = 0x4, offset = 0x4, fixed_abs, tag = 'smem constant byte address 0x4 - core index']
  #allocation1 [shape = 'u32[144,128]{1,0:T(1,128)}', space=vmem, size = 0x12000, scoped, tag = 'internal scratch']
  %s0 = inlined_call_operand.hbm [shape: f32[2,32,256], index: 0, kind: input, shape index: {}]
  %s1 = inlined_call_operand.vmem [shape: f32[4,32], index: 1, kind: input, shape index: {}]
  %s2 = inlined_call_operand.vmem [shape: f32[32,4], index: 2, kind: input, shape index: {}]
  %s3 = inlined_call_operand.hbm [shape: f32[2,32,256], index: 3, kind: output, shape index: {}]
  %s4 = sld [smem:[#allocation0]]
  $region49: #{tpu_custom_call.1} parent=0
    _
  %s6 = ssub.s32 1, %s4
  %s7 = scalar_select 0, %s6, %s4
  $region1: #{tpu_custom_call.1} parent=0
    #allocation2 [shape = 'u8[65536]{0}', space=vmem, size = 0x10000, scoped, tag = 'input window, operand 0']
    #allocation3 [shape = 's32[2]{0}', space=sflag, size = 0x8, scoped, tag = 'scoped memory for tpu_custom_call.1']
    #allocation4 [shape = 's32[2]{0}', space=sflag, size = 0x8, scoped, tag = 'scoped memory for tpu_custom_call.1']
    #allocation5 [shape = 'u8[65536]{0}', space=vmem, size = 0x10000, scoped, tag = 'output window, operand 0']
    %8 = vsyncpa [#allocation3], 0
    %s9 = scalar_lea.sflag [#allocation3], 1
    %10 = vsyncpa %s9, 0
    %11 = vsyncpa [#allocation4], 0
    %s12 = scalar_lea.sflag [#allocation4], 1
    %13 = vsyncpa %s12, 0
    loop: start=0, step=1, limit=4
    $region2: #{tpu_custom_call.1} parent=1 // loop_pre_header
      _
    $region3: #{tpu_custom_call.1} parent=1 // loop_header
      %s15 = sphi 0, %s19
      %p16 = scmp.ge.s32.totalorder %s15, 4
      %s25 = sphi 0, %s27
      %s28 = sphi 0, %s25
      %s29 = sphi 0, %s28
      %s45 = sphi 0, %s29
      %s49 = sphi 0, %s49
      %s51 = sphi 0, %s49
      %s52 = sphi 0, %s51
      %s66 = sphi 0, %s52
      %s70 = sphi 0, %s70
      %s72 = sphi 0, %s70
      %s73 = sphi 0, %s72
      %s87 = sphi 0, %s73
      %s93 = sphi 0, %s95
      %s96 = sphi 0, %s93
      %s97 = sphi 0, %s96
      %s113 = sphi 0, %s97
    $region4: #{tpu_custom_call.1} parent=1 // loop_header_branch
      %18 = sbr.rel (%p16) target = $region8
    $region5: #{tpu_custom_call.1} parent=1 // loop_body
      %s20 = ssub.s32 %s15, 1
      %s21 = ssub.s32 %s15, 2
      %s22 = sadd.s32 %s15, 1
      %s23 = ssub.s32 %s15, %s22
      %p24 = scmp.eq.s32.totalorder %s23, 0
      %s26 = sadd.s32 %s25, 1
      %s27 = scalar_select %p24, %s25, %s26
      %p30 = pneg %p24
      %p31 = scmp.eq.s32.totalorder %s15, 1
      %p32 = por %p30, %p31
      %p33 = scmp.ne.s32.totalorder %s25, %s28
      %p34 = scmp.eq.s32.totalorder %s15, 0
      %p35 = por %p33, %p34
      %p36 = scmp.ne.s32.totalorder %s25, %s28
      %p37 = scmp.eq.s32.totalorder %s20, 1
      %p38 = por %p36, %p37
      %p39 = scmp.ne.s32.totalorder %s28, %s29
      %p40 = scmp.eq.s32.totalorder %s20, 0
      %p41 = por %p39, %p40
      %p42 = scmp.ne.s32.totalorder %s28, %s29
      %p43 = scmp.eq.s32.totalorder %s21, 1
      %p44 = por %p42, %p43
      %p46 = scmp.ne.s32.totalorder %s29, %s45
      %p47 = scmp.eq.s32.totalorder %s21, 0
      %p48 = por %p46, %p47
      %s50 = sadd.s32 %s49, 1
      %p53 = scmp.eq.s32.totalorder %s15, 1
      %p54 = scmp.ne.s32.totalorder %s49, %s51
      %p55 = scmp.eq.s32.totalorder %s15, 0
      %p56 = por %p54, %p55
      %p57 = scmp.ne.s32.totalorder %s49, %s51
      %p58 = scmp.eq.s32.totalorder %s20, 1
      %p59 = por %p57, %p58
      %p60 = scmp.ne.s32.totalorder %s51, %s52
      %p61 = scmp.eq.s32.totalorder %s20, 0
      %p62 = por %p60, %p61
      %p63 = scmp.ne.s32.totalorder %s51, %s52
      %p64 = scmp.eq.s32.totalorder %s21, 1
      %p65 = por %p63, %p64
      %p67 = scmp.ne.s32.totalorder %s52, %s66
      %p68 = scmp.eq.s32.totalorder %s21, 0
      %p69 = por %p67, %p68
      %s71 = sadd.s32 %s70, 1
      %p74 = scmp.eq.s32.totalorder %s15, 1
      %p75 = scmp.ne.s32.totalorder %s70, %s72
      %p76 = scmp.eq.s32.totalorder %s15, 0
      %p77 = por %p75, %p76
      %p78 = scmp.ne.s32.totalorder %s70, %s72
      %p79 = scmp.eq.s32.totalorder %s20, 1
      %p80 = por %p78, %p79
      %p81 = scmp.ne.s32.totalorder %s72, %s73
      %p82 = scmp.eq.s32.totalorder %s20, 0
      %p83 = por %p81, %p82
      %p84 = scmp.ne.s32.totalorder %s72, %s73
      %p85 = scmp.eq.s32.totalorder %s21, 1
      %p86 = por %p84, %p85
      %p88 = scmp.ne.s32.totalorder %s73, %s87
      %p89 = scmp.eq.s32.totalorder %s21, 0
      %p90 = por %p88, %p89
      %s91 = ssub.s32 %s15, %s22
      %p92 = scmp.eq.s32.totalorder %s91, 0
      %s94 = sadd.s32 %s93, 1
      %s95 = scalar_select %p92, %s93, %s94
      %p98 = pneg %p92
      %p99 = scmp.eq.s32.totalorder %s15, 1
      %p100 = por %p98, %p99
      %p101 = scmp.ne.s32.totalorder %s93, %s96
      %p102 = scmp.eq.s32.totalorder %s15, 0
      %p103 = por %p101, %p102
      %p104 = scmp.ne.s32.totalorder %s93, %s96
      %p105 = scmp.eq.s32.totalorder %s20, 1
      %p106 = por %p104, %p105
      %p107 = scmp.ne.s32.totalorder %s96, %s97
      %p108 = scmp.eq.s32.totalorder %s20, 0
      %p109 = por %p107, %p108
      %p110 = scmp.ne.s32.totalorder %s96, %s97
      %p111 = scmp.eq.s32.totalorder %s21, 1
      %p112 = por %p110, %p111
      %p114 = scmp.ne.s32.totalorder %s97, %s113
      %p115 = scmp.eq.s32.totalorder %s21, 0
      %p116 = por %p114, %p115
      %p117 = scmp.le.s32.totalorder 1, %s15
      %p118 = scmp.lt.s32.totalorder %s15, 3
      %p119 = pnand %p117, %p118
      %p120 = pneg %p119
      // Predicated region
      $region9: #{tpu_custom_call.1} parent=5 // pred_check
        _
      $region10: #{tpu_custom_call.1} parent=5 // pred_check_branch
        %122 = sbr.rel (%p119) target = $region12
      $region11: #{tpu_custom_call.1} parent=5 // pred_region
        %s123 = ssub.s32 %s15, 1
        // Predicated region
        $region13: #{tpu_custom_call.1} parent=11 // pred_check
          %p124 = pneg %p62
        $region14: #{tpu_custom_call.1} parent=11 // pred_check_branch
          %126 = sbr.rel (%p124) target = $region16
        $region15: #{tpu_custom_call.1} parent=11 // pred_region
          _
        $region16: #{tpu_custom_call.1} parent=11 // pred_fallthru
          _
        // Predicated region
        $region17: #{tpu_custom_call.1} parent=11 // pred_check
          %p127 = pneg %p83
        $region18: #{tpu_custom_call.1} parent=11 // pred_check_branch
          %129 = sbr.rel (%p127) target = $region20
        $region19: #{tpu_custom_call.1} parent=11 // pred_region
          _
        $region20: #{tpu_custom_call.1} parent=11 // pred_fallthru
          _
      $region12: #{tpu_custom_call.1} parent=5 // pred_fallthru
        _
      %p130 = scmp.lt.s32.totalorder %s15, 2
      // Predicated region
      $region21: #{tpu_custom_call.1} parent=5 // pred_check
        %p131 = pneg %p130
      $region22: #{tpu_custom_call.1} parent=5 // pred_check_branch
        %133 = sbr.rel (%p131) target = $region24
      $region23: #{tpu_custom_call.1} parent=5 // pred_region
        // Predicated region
        $region25: #{tpu_custom_call.1} parent=23 // pred_check
          %p134 = pneg %p35
        $region26: #{tpu_custom_call.1} parent=23 // pred_check_branch
          %136 = sbr.rel (%p134) target = $region28
        $region27: #{tpu_custom_call.1} parent=23 // pred_region
          %s137 = sand.u32 %s25, 1
          %s138 = scalar_lea.sflag [#allocation3], %s137
          %s139 = sand.u32 %s25, 1
          %s140 = smul.addr %s139, 64
          %s141 = scalar_lea.vmem [#allocation2], %s140
          %s143 = ssub.s32 1024, 1024
          %144 = vsyncadd %s138, %s143
          %s145 = smul.addr %s15, 8
          %s146 = smul.addr %s145, 128
          %s147 = scalar_lea.hbm %s0, %s146
          %s148 = sshll.u32 %s141, 4
          %s149 = int_to_ptr.vmem [resolvable:$true] %s148
          %154 = dma.hbm_to_vmem [thread:$0]  %s147, 1024, %s149, %s138, 256, 256, 16
        $region28: #{tpu_custom_call.1} parent=23 // pred_fallthru
          _
      $region24: #{tpu_custom_call.1} parent=5 // pred_fallthru
        _
      %p155 = scmp.le.s32.totalorder 1, %s15
      %p156 = scmp.lt.s32.totalorder %s15, 3
      %p157 = pnand %p155, %p156
      %p158 = pneg %p157
      // Predicated region
      $region29: #{tpu_custom_call.1} parent=5 // pred_check
        _
      $region30: #{tpu_custom_call.1} parent=5 // pred_check_branch
        %160 = sbr.rel (%p157) target = $region32
      $region31: #{tpu_custom_call.1} parent=5 // pred_region
        %s161 = ssub.s32 %s15, 1
        %s162 = sand.u32 %s28, 1
        %s163 = scalar_lea.sflag [#allocation3], %s162
        %s164 = sand.u32 %s28, 1
        %s165 = smul.addr %s164, 64
        %s166 = scalar_lea.vmem [#allocation2], %s165
        // Predicated region
        $region33: #{tpu_custom_call.1} parent=31 // pred_check
          %p167 = pneg %p41
        $region34: #{tpu_custom_call.1} parent=31 // pred_check_branch
          %169 = sbr.rel (%p167) target = $region36
        $region35: #{tpu_custom_call.1} parent=31 // pred_region
          %170 = dma.done %s163, 1024
        $region36: #{tpu_custom_call.1} parent=31 // pred_fallthru
          _
        %s171 = sand.u32 %s28, 1
        %s172 = scalar_lea.sflag [#allocation3], %s171
        %s173 = sand.u32 %s28, 1
        %s174 = smul.addr %s173, 64
        %s175 = scalar_lea.vmem [#allocation2], %s174
        %p176 = pneg %p41
        %p177 = pneg %p38
        %p178 = pneg %p62
        %p179 = pneg %p59
        %p180 = pneg %p83
        %p181 = pneg %p80
        %p182 = pneg %p109
        %p183 = pneg %p106
        %s184 = sand.u32 %s96, 1
        %s185 = scalar_lea.sflag [#allocation4], %s184
        %s186 = sand.u32 %s96, 1
        %s187 = smul.addr %s186, 64
        %s188 = scalar_lea.vmem [#allocation5], %s187
        %v189 = vld [vmem:[%s166] sm:$0xff]
        %v190 = vld [vmem:[%s166 + $0x8] sm:$0xff]
        %v191 = vld [vmem:[%s166 + $0x10] sm:$0xff]
        %v192 = vld [vmem:[%s166 + $0x18] sm:$0xff]
        %v193 = vld [vmem:[%s166 + $0x20] sm:$0xff]
        %v194 = vld [vmem:[%s166 + $0x28] sm:$0xff]
        %v195 = vld [vmem:[%s166 + $0x30] sm:$0xff]
        %v196 = vld [vmem:[%s166 + $0x38] sm:$0xff]
        %v197 = vadd.f32 %v189, %v190
        %198 = vadd.xlane.f32.xlu0 %v197
        %v199 = vpop.xlane.xlu0 %198
        %v200 = vadd.f32 %v191, %v192
        %201 = vadd.xlane.f32.xlu0 %v200
        %v202 = vpop.xlane.xlu0 %201
        %v203 = vadd.f32 %v193, %v194
        %204 = vadd.xlane.f32.xlu0 %v203
        %v205 = vpop.xlane.xlu0 %204
        %v206 = vadd.f32 %v195, %v196
        %207 = vadd.xlane.f32.xlu0 %v206
        %v208 = vpop.xlane.xlu0 %207
        %v209 = vmax.f32 %v189, %v190
        %210 = vmax.xlane.f32.xlu0 %v209
        %v211 = vpop.xlane.xlu0 %210
        %v212 = vmax.f32 %v191, %v192
        %213 = vmax.xlane.f32.xlu0 %v212
        %v214 = vpop.xlane.xlu0 %213
        %v215 = vmax.f32 %v193, %v194
        %216 = vmax.xlane.f32.xlu0 %v215
        %v217 = vpop.xlane.xlu0 %216
        %v218 = vmax.f32 %v195, %v196
        %219 = vmax.xlane.f32.xlu0 %v218
        %v220 = vpop.xlane.xlu0 %219
        %v221 = vmul.f32 %v199, 0.00390625
        %v222 = vmul.f32 %v202, 0.00390625
        %v223 = vmul.f32 %v205, 0.00390625
        %v224 = vmul.f32 %v208, 0.00390625
        %v225 = vlaneseq
        %v226 = vand.u32 %v225, 127
        %vm227 = vcmp.eq.s32.totalorder %v226, 0
        %v228 = vsel %vm227, %v221, %v211
        %v229 = vsel %vm227, %v222, %v214
        %v230 = vsel %vm227, %v223, %v217
        %v231 = vsel %vm227, %v224, %v220
        %v232 = vld [vmem:[%s1] sm:$0xf]
        %v233 = vld [vmem:[%s2] sm:$0xff]
        %v234 = vld [vmem:[%s2 + $0x8] sm:$0xff]
        %v235 = vld [vmem:[%s2 + $0x10] sm:$0xff]
        %v236 = vld [vmem:[%s2 + $0x18] sm:$0xff]
        %vm237 = vcmask 261120
        %v239 = vsel %vm237, %v232, 0
        %241 = vmatprep.subr.mxu0 0.0
        %v242 = vand.u32 %v228, 4294901760
        %243 = vmatpush1.msra.mxu0 %v242
        %244 = vmatprep.subr.mxu0 0.0
        %v245 = vand.u32 %v229, 4294901760
        %246 = vmatpush1.msra.mxu0 %v245
        %247 = vmatprep.subr.mxu0 0.0
        %v248 = vand.u32 %v230, 4294901760
        %249 = vmatpush1.msra.mxu0 %v248
        %250 = vmatprep.subr.mxu0 0.0
        %v251 = vand.u32 %v231, 4294901760
        %252 = vmatpush1.msra.mxu0 %v251
        %253 = vmatprep.subr.mxu0 0.0
        %254 = vmatpush1.msra.mxu0 0.0
        %255 = vmatprep.subr.mxu0 0.0
        %256 = vmatpush1.msra.mxu0 0.0
        %257 = vmatprep.subr.mxu0 0.0
        %258 = vmatpush1.msra.mxu0 0.0
        %259 = vmatprep.subr.mxu0 0.0
        %260 = vmatpush1.msra.mxu0 0.0
        %261 = vmatprep.subr.mxu0 0.0
        %262 = vmatpush1.msra.mxu0 0.0
        %263 = vmatprep.subr.mxu0 0.0
        %264 = vmatpush1.msra.mxu0 0.0
        %265 = vmatprep.subr.mxu0 0.0
        %266 = vmatpush1.msra.mxu0 0.0
        %267 = vmatprep.subr.mxu0 0.0
        %268 = vmatpush1.msra.mxu0 0.0
        %269 = vmatprep.subr.mxu0 0.0
        %270 = vmatpush1.msra.mxu0 0.0
        %271 = vmatprep.subr.mxu0 0.0
        %272 = vmatpush1.msra.mxu0 0.0
        %273 = vmatprep.subr.mxu0 0.0
        %274 = vmatpush1.msra.mxu0 0.0
        %275 = vmatprep.subr.mxu0 0.0
        %276 = vmatpush1.msra.mxu0 0.0
        %277 = vmatprep.subr.mxu0 0.0
        %278 = vmatpush1.msra.mxu0 0.0
        %279 = vmatprep.subr.mxu0 0.0
        %280 = vmatpush1.msra.mxu0 0.0
        %281 = vmatprep.subr.mxu0 0.0
        %282 = vmatpush1.msra.mxu0 0.0
        %283 = vmatprep.subr.mxu0 0.0
        %284 = vmatpush1.msra.mxu0 0.0
        %285 = vmatprep.subr.mxu0 0.0
        %286 = vmatpush1.msra.mxu0 0.0
        %287 = vmatprep.subr.mxu0 0.0
        %288 = vmatpush1.msra.mxu0 0.0
        %289 = vmatprep.subr.mxu0 0.0
        %290 = vmatpush1.msra.mxu0 0.0
        %291 = vmatprep.subr.mxu0 0.0
        %292 = vmatpush1.msra.mxu0 0.0
        %293 = vmatprep.subr.mxu0 0.0
        %294 = vmatpush1.msra.mxu0 0.0
        %295 = vmatprep.subr.mxu0 0.0
        %296 = vmatpush1.msra.mxu0 0.0
        %297 = vmatprep.subr.mxu0 0.0
        %298 = vmatpush1.msra.mxu0 0.0
        %299 = vmatprep.subr.mxu0 0.0
        %300 = vmatpush1.msra.mxu0 0.0
        %301 = vmatprep.subr.mxu0 0.0
        %302 = vmatpush1.msra.mxu0 0.0
        %303 = vmatprep.subr.mxu0 0.0
        %304 = vmatpush1.msra.mxu0 0.0
        %305 = vmatprep.subr.mxu0 0.0
        %306 = vmatpush1.msra.mxu0 0.0
        %307 = vmatprep.subr.mxu0 0.0
        %308 = vmatpush1.msra.mxu0 0.0
        %309 = vmatprep.mubr.f32.mxu0 0.0
        %v310 = vand.u32 %v239, 4294901760
        %v311 = vsub.f32 %v239, %v310
        %v312 = vand.u32 %v311, 4294901760
        %v313 = vsub.f32 %v311, %v312
        %v314 = vand.u32 %v313, 4294901760
        %315 = vmatmul.mubr.f32.gmra.mrb[0].mxu0 %v314
        %v316 = vpop.f32.mrb[0].mxu0
        %v317 = vadd.f32 0.0, %v316
        %v318 = vpop.f32.mrb[0].mxu0
        %319 = vdwg.mxu0
        %320 = vmatprep.subr.mxu0 0.0
        %v321 = vand.u32 %v228, 4294901760
        %v322 = vsub.f32 %v228, %v321
        %v323 = vand.u32 %v322, 4294901760
        %v324 = vsub.f32 %v322, %v323
        %v325 = vand.u32 %v324, 4294901760
        %326 = vmatpush1.msra.mxu0 %v325
        %327 = vmatprep.subr.mxu0 0.0
        %v328 = vand.u32 %v229, 4294901760
        %v329 = vsub.f32 %v229, %v328
        %v330 = vand.u32 %v329, 4294901760
        %v331 = vsub.f32 %v329, %v330
        %v332 = vand.u32 %v331, 4294901760
        %333 = vmatpush1.msra.mxu0 %v332
        %334 = vmatprep.subr.mxu0 0.0
        %v335 = vand.u32 %v230, 4294901760
        %v336 = vsub.f32 %v230, %v335
        %v337 = vand.u32 %v336, 4294901760
        %v338 = vsub.f32 %v336, %v337
        %v339 = vand.u32 %v338, 4294901760
        %340 = vmatpush1.msra.mxu0 %v339
        %341 = vmatprep.subr.mxu0 0.0
        %v342 = vand.u32 %v231, 4294901760
        %v343 = vsub.f32 %v231, %v342
        %v344 = vand.u32 %v343, 4294901760
        %v345 = vsub.f32 %v343, %v344
        %v346 = vand.u32 %v345, 4294901760
        %347 = vmatpush1.msra.mxu0 %v346
        %348 = vmatprep.subr.mxu0 0.0
        %349 = vmatpush1.msra.mxu0 0.0
        %350 = vmatprep.subr.mxu0 0.0
        %351 = vmatpush1.msra.mxu0 0.0
        %352 = vmatprep.subr.mxu0 0.0
        %353 = vmatpush1.msra.mxu0 0.0
        %354 = vmatprep.subr.mxu0 0.0
        %355 = vmatpush1.msra.mxu0 0.0
        %356 = vmatprep.subr.mxu0 0.0
        %357 = vmatpush1.msra.mxu0 0.0
        %358 = vmatprep.subr.mxu0 0.0
        %359 = vmatpush1.msra.mxu0 0.0
        %360 = vmatprep.subr.mxu0 0.0
        %361 = vmatpush1.msra.mxu0 0.0
        %362 = vmatprep.subr.mxu0 0.0
        %363 = vmatpush1.msra.mxu0 0.0
        %364 = vmatprep.subr.mxu0 0.0
        %365 = vmatpush1.msra.mxu0 0.0
        %366 = vmatprep.subr.mxu0 0.0
        %367 = vmatpush1.msra.mxu0 0.0
        %368 = vmatprep.subr.mxu0 0.0
        %369 = vmatpush1.msra.mxu0 0.0
        %370 = vmatprep.subr.mxu0 0.0
        %371 = vmatpush1.msra.mxu0 0.0
        %372 = vmatprep.subr.mxu0 0.0
        %373 = vmatpush1.msra.mxu0 0.0
        %374 = vmatprep.subr.mxu0 0.0
        %375 = vmatpush1.msra.mxu0 0.0
        %376 = vmatprep.subr.mxu0 0.0
        %377 = vmatpush1.msra.mxu0 0.0
        %378 = vmatprep.subr.mxu0 0.0
        %379 = vmatpush1.msra.mxu0 0.0
        %380 = vmatprep.subr.mxu0 0.0
        %381 = vmatpush1.msra.mxu0 0.0
        %382 = vmatprep.subr.mxu0 0.0
        %383 = vmatpush1.msra.mxu0 0.0
        %384 = vmatprep.subr.mxu0 0.0
        %385 = vmatpush1.msra.mxu0 0.0
        %386 = vmatprep.subr.mxu0 0.0
        %387 = vmatpush1.msra.mxu0 0.0
        %388 = vmatprep.subr.mxu0 0.0
        %389 = vmatpush1.msra.mxu0 0.0
        %390 = vmatprep.subr.mxu0 0.0
        %391 = vmatpush1.msra.mxu0 0.0
        %392 = vmatprep.subr.mxu0 0.0
        %393 = vmatpush1.msra.mxu0 0.0
        %394 = vmatprep.subr.mxu0 0.0
        %395 = vmatpush1.msra.mxu0 0.0
        %396 = vmatprep.subr.mxu0 0.0
        %397 = vmatpush1.msra.mxu0 0.0
        %398 = vmatprep.subr.mxu0 0.0
        %399 = vmatpush1.msra.mxu0 0.0
        %400 = vmatprep.subr.mxu0 0.0
        %401 = vmatpush1.msra.mxu0 0.0
        %402 = vmatprep.subr.mxu0 0.0
        %403 = vmatpush1.msra.mxu0 0.0
        %404 = vmatprep.mubr.f32.mxu0 0.0
        %v405 = vand.u32 %v239, 4294901760
        %406 = vmatmul.mubr.f32.gmra.mrb[0].mxu0 %v405
        %v407 = vpop.f32.mrb[0].mxu0
        %v408 = vadd.f32 %v317, %v407
        %v409 = vpop.f32.mrb[0].mxu0
        %410 = vdwg.mxu0
        %411 = vmatprep.subr.mxu0 0.0
        %v412 = vand.u32 %v228, 4294901760
        %v413 = vsub.f32 %v228, %v412
        %414 = vmatpush1.msra.mxu0 %v413
        %415 = vmatprep.subr.mxu0 0.0
        %v416 = vand.u32 %v229, 4294901760
        %v417 = vsub.f32 %v229, %v416
        %418 = vmatpush1.msra.mxu0 %v417
        %419 = vmatprep.subr.mxu0 0.0
        %v420 = vand.u32 %v230, 4294901760
        %v421 = vsub.f32 %v230, %v420
        %422 = vmatpush1.msra.mxu0 %v421
        %423 = vmatprep.subr.mxu0 0.0
        %v424 = vand.u32 %v231, 4294901760
        %v425 = vsub.f32 %v231, %v424
        %426 = vmatpush1.msra.mxu0 %v425
        %427 = vmatprep.subr.mxu0 0.0
        %428 = vmatpush1.msra.mxu0 0.0
        %429 = vmatprep.subr.mxu0 0.0
        %430 = vmatpush1.msra.mxu0 0.0
        %431 = vmatprep.subr.mxu0 0.0
        %432 = vmatpush1.msra.mxu0 0.0
        %433 = vmatprep.subr.mxu0 0.0
        %434 = vmatpush1.msra.mxu0 0.0
        %435 = vmatprep.subr.mxu0 0.0
        %436 = vmatpush1.msra.mxu0 0.0
        %437 = vmatprep.subr.mxu0 0.0
        %438 = vmatpush1.msra.mxu0 0.0
        %439 = vmatprep.subr.mxu0 0.0
        %440 = vmatpush1.msra.mxu0 0.0
        %441 = vmatprep.subr.mxu0 0.0
        %442 = vmatpush1.msra.mxu0 0.0
        %443 = vmatprep.subr.mxu0 0.0
        %444 = vmatpush1.msra.mxu0 0.0
        %445 = vmatprep.subr.mxu0 0.0
        %446 = vmatpush1.msra.mxu0 0.0
        %447 = vmatprep.subr.mxu0 0.0
        %448 = vmatpush1.msra.mxu0 0.0
        %449 = vmatprep.subr.mxu0 0.0
        %450 = vmatpush1.msra.mxu0 0.0
        %451 = vmatprep.subr.mxu0 0.0
        %452 = vmatpush1.msra.mxu0 0.0
        %453 = vmatprep.subr.mxu0 0.0
        %454 = vmatpush1.msra.mxu0 0.0
        %455 = vmatprep.subr.mxu0 0.0
        %456 = vmatpush1.msra.mxu0 0.0
        %457 = vmatprep.subr.mxu0 0.0
        %458 = vmatpush1.msra.mxu0 0.0
        %459 = vmatprep.subr.mxu0 0.0
        %460 = vmatpush1.msra.mxu0 0.0
        %461 = vmatprep.subr.mxu0 0.0
        %462 = vmatpush1.msra.mxu0 0.0
        %463 = vmatprep.subr.mxu0 0.0
        %464 = vmatpush1.msra.mxu0 0.0
        %465 = vmatprep.subr.mxu0 0.0
        %466 = vmatpush1.msra.mxu0 0.0
        %467 = vmatprep.subr.mxu0 0.0
        %468 = vmatpush1.msra.mxu0 0.0
        %469 = vmatprep.subr.mxu0 0.0
        %470 = vmatpush1.msra.mxu0 0.0
        %471 = vmatprep.subr.mxu0 0.0
        %472 = vmatpush1.msra.mxu0 0.0
        %473 = vmatprep.subr.mxu0 0.0
        %474 = vmatpush1.msra.mxu0 0.0
        %475 = vmatprep.subr.mxu0 0.0
        %476 = vmatpush1.msra.mxu0 0.0
        %477 = vmatprep.subr.mxu0 0.0
        %478 = vmatpush1.msra.mxu0 0.0
        %479 = vmatprep.subr.mxu0 0.0
        %480 = vmatpush1.msra.mxu0 0.0
        %481 = vmatprep.subr.mxu0 0.0
        %482 = vmatpush1.msra.mxu0 0.0
        %483 = vmatprep.mubr.f32.mxu0 0.0
        %v484 = vand.u32 %v239, 4294901760
        %v485 = vsub.f32 %v239, %v484
        %486 = vmatmul.mubr.f32.gmra.mrb[0].mxu0 %v485
        %v487 = vpop.f32.mrb[0].mxu0
        %v488 = vadd.f32 %v408, %v487
        %v489 = vpop.f32.mrb[0].mxu0
        %490 = vdwg.mxu0
        %491 = vmatprep.subr.mxu0 0.0
        %v492 = vand.u32 %v228, 4294901760
        %493 = vmatpush1.msra.mxu0 %v492
        %494 = vmatprep.subr.mxu0 0.0
        %v495 = vand.u32 %v229, 4294901760
        %496 = vmatpush1.msra.mxu0 %v495
        %497 = vmatprep.subr.mxu0 0.0
        %v498 = vand.u32 %v230, 4294901760
        %499 = vmatpush1.msra.mxu0 %v498
        %500 = vmatprep.subr.mxu0 0.0
        %v501 = vand.u32 %v231, 4294901760
        %502 = vmatpush1.msra.mxu0 %v501
        %503 = vmatprep.subr.mxu0 0.0
        %504 = vmatpush1.msra.mxu0 0.0
        %505 = vmatprep.subr.mxu0 0.0
        %506 = vmatpush1.msra.mxu0 0.0
        %507 = vmatprep.subr.mxu0 0.0
        %508 = vmatpush1.msra.mxu0 0.0
        %509 = vmatprep.subr.mxu0 0.0
        %510 = vmatpush1.msra.mxu0 0.0
        %511 = vmatprep.subr.mxu0 0.0
        %512 = vmatpush1.msra.mxu0 0.0
        %513 = vmatprep.subr.mxu0 0.0
        %514 = vmatpush1.msra.mxu0 0.0
        %515 = vmatprep.subr.mxu0 0.0
        %516 = vmatpush1.msra.mxu0 0.0
        %517 = vmatprep.subr.mxu0 0.0
        %518 = vmatpush1.msra.mxu0 0.0
        %519 = vmatprep.subr.mxu0 0.0
        %520 = vmatpush1.msra.mxu0 0.0
        %521 = vmatprep.subr.mxu0 0.0
        %522 = vmatpush1.msra.mxu0 0.0
        %523 = vmatprep.subr.mxu0 0.0
        %524 = vmatpush1.msra.mxu0 0.0
        %525 = vmatprep.subr.mxu0 0.0
        %526 = vmatpush1.msra.mxu0 0.0
        %527 = vmatprep.subr.mxu0 0.0
        %528 = vmatpush1.msra.mxu0 0.0
        %529 = vmatprep.subr.mxu0 0.0
        %530 = vmatpush1.msra.mxu0 0.0
        %531 = vmatprep.subr.mxu0 0.0
        %532 = vmatpush1.msra.mxu0 0.0
        %533 = vmatprep.subr.mxu0 0.0
        %534 = vmatpush1.msra.mxu0 0.0
        %535 = vmatprep.subr.mxu0 0.0
        %536 = vmatpush1.msra.mxu0 0.0
        %537 = vmatprep.subr.mxu0 0.0
        %538 = vmatpush1.msra.mxu0 0.0
        %539 = vmatprep.subr.mxu0 0.0
        %540 = vmatpush1.msra.mxu0 0.0
        %541 = vmatprep.subr.mxu0 0.0
        %542 = vmatpush1.msra.mxu0 0.0
        %543 = vmatprep.subr.mxu0 0.0
        %544 = vmatpush1.msra.mxu0 0.0
        %545 = vmatprep.subr.mxu0 0.0
        %546 = vmatpush1.msra.mxu0 0.0
        %547 = vmatprep.subr.mxu0 0.0
        %548 = vmatpush1.msra.mxu0 0.0
        %549 = vmatprep.subr.mxu0 0.0
        %550 = vmatpush1.msra.mxu0 0.0
        %551 = vmatprep.subr.mxu0 0.0
        %552 = vmatpush1.msra.mxu0 0.0
        %553 = vmatprep.subr.mxu0 0.0
        %554 = vmatpush1.msra.mxu0 0.0
        %555 = vmatprep.subr.mxu0 0.0
        %556 = vmatpush1.msra.mxu0 0.0
        %557 = vmatprep.subr.mxu0 0.0
        %558 = vmatpush1.msra.mxu0 0.0
        %559 = vmatprep.mubr.f32.mxu0 0.0
        %v560 = vand.u32 %v239, 4294901760
        %v561 = vsub.f32 %v239, %v560
        %v562 = vand.u32 %v561, 4294901760
        %563 = vmatmul.mubr.f32.gmra.mrb[0].mxu0 %v562
        %v564 = vpop.f32.mrb[0].mxu0
        %v565 = vadd.f32 %v488, %v564
        %v566 = vpop.f32.mrb[0].mxu0
        %567 = vdwg.mxu0
        %568 = vmatprep.subr.mxu0 0.0
        %v569 = vand.u32 %v228, 4294901760
        %v570 = vsub.f32 %v228, %v569
        %v571 = vand.u32 %v570, 4294901760
        %572 = vmatpush1.msra.mxu0 %v571
        %573 = vmatprep.subr.mxu0 0.0
        %v574 = vand.u32 %v229, 4294901760
        %v575 = vsub.f32 %v229, %v574
        %v576 = vand.u32 %v575, 4294901760
        %577 = vmatpush1.msra.mxu0 %v576
        %578 = vmatprep.subr.mxu0 0.0
        %v579 = vand.u32 %v230, 4294901760
        %v580 = vsub.f32 %v230, %v579
        %v581 = vand.u32 %v580, 4294901760
        %582 = vmatpush1.msra.mxu0 %v581
        %583 = vmatprep.subr.mxu0 0.0
        %v584 = vand.u32 %v231, 4294901760
        %v585 = vsub.f32 %v231, %v584
        %v586 = vand.u32 %v585, 4294901760
        %587 = vmatpush1.msra.mxu0 %v586
        %588 = vmatprep.subr.mxu0 0.0
        %589 = vmatpush1.msra.mxu0 0.0
        %590 = vmatprep.subr.mxu0 0.0
        %591 = vmatpush1.msra.mxu0 0.0
        %592 = vmatprep.subr.mxu0 0.0
        %593 = vmatpush1.msra.mxu0 0.0
        %594 = vmatprep.subr.mxu0 0.0
        %595 = vmatpush1.msra.mxu0 0.0
        %596 = vmatprep.subr.mxu0 0.0
        %597 = vmatpush1.msra.mxu0 0.0
        %598 = vmatprep.subr.mxu0 0.0
        %599 = vmatpush1.msra.mxu0 0.0
        %600 = vmatprep.subr.mxu0 0.0
        %601 = vmatpush1.msra.mxu0 0.0
        %602 = vmatprep.subr.mxu0 0.0
        %603 = vmatpush1.msra.mxu0 0.0
        %604 = vmatprep.subr.mxu0 0.0
        %605 = vmatpush1.msra.mxu0 0.0
        %606 = vmatprep.subr.mxu0 0.0
        %607 = vmatpush1.msra.mxu0 0.0
        %608 = vmatprep.subr.mxu0 0.0
        %609 = vmatpush1.msra.mxu0 0.0
        %610 = vmatprep.subr.mxu0 0.0
        %611 = vmatpush1.msra.mxu0 0.0
        %612 = vmatprep.subr.mxu0 0.0
        %613 = vmatpush1.msra.mxu0 0.0
        %614 = vmatprep.subr.mxu0 0.0
        %615 = vmatpush1.msra.mxu0 0.0
        %616 = vmatprep.subr.mxu0 0.0
        %617 = vmatpush1.msra.mxu0 0.0
        %618 = vmatprep.subr.mxu0 0.0
        %619 = vmatpush1.msra.mxu0 0.0
        %620 = vmatprep.subr.mxu0 0.0
        %621 = vmatpush1.msra.mxu0 0.0
        %622 = vmatprep.subr.mxu0 0.0
        %623 = vmatpush1.msra.mxu0 0.0
        %624 = vmatprep.subr.mxu0 0.0
        %625 = vmatpush1.msra.mxu0 0.0
        %626 = vmatprep.subr.mxu0 0.0
        %627 = vmatpush1.msra.mxu0 0.0
        %628 = vmatprep.subr.mxu0 0.0
        %629 = vmatpush1.msra.mxu0 0.0
        %630 = vmatprep.subr.mxu0 0.0
        %631 = vmatpush1.msra.mxu0 0.0
        %632 = vmatprep.subr.mxu0 0.0
        %633 = vmatpush1.msra.mxu0 0.0
        %634 = vmatprep.subr.mxu0 0.0
        %635 = vmatpush1.msra.mxu0 0.0
        %636 = vmatprep.subr.mxu0 0.0
        %637 = vmatpush1.msra.mxu0 0.0
        %638 = vmatprep.subr.mxu0 0.0
        %639 = vmatpush1.msra.mxu0 0.0
        %640 = vmatprep.subr.mxu0 0.0
        %641 = vmatpush1.msra.mxu0 0.0
        %642 = vmatprep.subr.mxu0 0.0
        %643 = vmatpush1.msra.mxu0 0.0
        %644 = vmatprep.mubr.f32.mxu0 0.0
        %v645 = vand.u32 %v239, 4294901760
        %646 = vmatmul.mubr.f32.gmra.mrb[0].mxu0 %v645
        %v647 = vpop.f32.mrb[0].mxu0
        %v648 = vadd.f32 %v565, %v647
        %v649 = vpop.f32.mrb[0].mxu0
        %650 = vdwg.mxu0
        %651 = vmatprep.subr.mxu0 0.0
        %v652 = vand.u32 %v228, 4294901760
        %653 = vmatpush1.msra.mxu0 %v652
        %654 = vmatprep.subr.mxu0 0.0
        %v655 = vand.u32 %v229, 4294901760
        %656 = vmatpush1.msra.mxu0 %v655
        %657 = vmatprep.subr.mxu0 0.0
        %v658 = vand.u32 %v230, 4294901760
        %659 = vmatpush1.msra.mxu0 %v658
        %660 = vmatprep.subr.mxu0 0.0
        %v661 = vand.u32 %v231, 4294901760
        %662 = vmatpush1.msra.mxu0 %v661
        %663 = vmatprep.subr.mxu0 0.0
        %664 = vmatpush1.msra.mxu0 0.0
        %665 = vmatprep.subr.mxu0 0.0
        %666 = vmatpush1.msra.mxu0 0.0
        %667 = vmatprep.subr.mxu0 0.0
        %668 = vmatpush1.msra.mxu0 0.0
        %669 = vmatprep.subr.mxu0 0.0
        %670 = vmatpush1.msra.mxu0 0.0
        %671 = vmatprep.subr.mxu0 0.0
        %672 = vmatpush1.msra.mxu0 0.0
        %673 = vmatprep.subr.mxu0 0.0
        %674 = vmatpush1.msra.mxu0 0.0
        %675 = vmatprep.subr.mxu0 0.0
        %676 = vmatpush1.msra.mxu0 0.0
        %677 = vmatprep.subr.mxu0 0.0
        %678 = vmatpush1.msra.mxu0 0.0
        %679 = vmatprep.subr.mxu0 0.0
        %680 = vmatpush1.msra.mxu0 0.0
        %681 = vmatprep.subr.mxu0 0.0
        %682 = vmatpush1.msra.mxu0 0.0
        %683 = vmatprep.subr.mxu0 0.0
        %684 = vmatpush1.msra.mxu0 0.0
        %685 = vmatprep.subr.mxu0 0.0
        %686 = vmatpush1.msra.mxu0 0.0
        %687 = vmatprep.subr.mxu0 0.0
        %688 = vmatpush1.msra.mxu0 0.0
        %689 = vmatprep.subr.mxu0 0.0
        %690 = vmatpush1.msra.mxu0 0.0
        %691 = vmatprep.subr.mxu0 0.0
        %692 = vmatpush1.msra.mxu0 0.0
        %693 = vmatprep.subr.mxu0 0.0
        %694 = vmatpush1.msra.mxu0 0.0
        %695 = vmatprep.subr.mxu0 0.0
        %696 = vmatpush1.msra.mxu0 0.0
        %697 = vmatprep.subr.mxu0 0.0
        %698 = vmatpush1.msra.mxu0 0.0
        %699 = vmatprep.subr.mxu0 0.0
        %700 = vmatpush1.msra.mxu0 0.0
        %701 = vmatprep.subr.mxu0 0.0
        %702 = vmatpush1.msra.mxu0 0.0
        %703 = vmatprep.subr.mxu0 0.0
        %704 = vmatpush1.msra.mxu0 0.0
        %705 = vmatprep.subr.mxu0 0.0
        %706 = vmatpush1.msra.mxu0 0.0
        %707 = vmatprep.subr.mxu0 0.0
        %708 = vmatpush1.msra.mxu0 0.0
        %709 = vmatprep.subr.mxu0 0.0
        %710 = vmatpush1.msra.mxu0 0.0
        %711 = vmatprep.subr.mxu0 0.0
        %712 = vmatpush1.msra.mxu0 0.0
        %713 = vmatprep.subr.mxu0 0.0
        %714 = vmatpush1.msra.mxu0 0.0
        %715 = vmatprep.subr.mxu0 0.0
        %716 = vmatpush1.msra.mxu0 0.0
        %717 = vmatprep.subr.mxu0 0.0
        %718 = vmatpush1.msra.mxu0 0.0
        %719 = vmatprep.mubr.f32.mxu0 0.0
        %v720 = vand.u32 %v239, 4294901760
        %721 = vmatmul.mubr.f32.gmra.mrb[0].mxu0 %v720
        %v722 = vpop.f32.mrb[0].mxu0
        %v723 = vadd.f32 %v648, %v722
        %v724 = vpop.f32.mrb[0].mxu0
        %725 = vdwg.mxu0
        %v726 = vmax.f32 %v723, 0.0
        %vm727 = vcmask 31744
        %v729 = vsel %vm727, %v233, 0
        %v732 = vsel %vm727, %v234, 0
        %v735 = vsel %vm727, %v235, 0
        %v738 = vsel %vm727, %v236, 0
        %vm740 = vcmask 1043456
        %v742 = vsel %vm740, %v726, 0
        %744 = vmatprep.subr.mxu0 0.0
        %v745 = vand.u32 %v742, 4294901760
        %746 = vmatpush1.msra.mxu0 %v745
        %747 = vmatprep.subr.mxu0 0.0
        %748 = vmatpush1.msra.mxu0 0.0
        %749 = vmatprep.subr.mxu0 0.0
        %750 = vmatpush1.msra.mxu0 0.0
        %751 = vmatprep.subr.mxu0 0.0
        %752 = vmatpush1.msra.mxu0 0.0
        %753 = vmatprep.subr.mxu0 0.0
        %754 = vmatpush1.msra.mxu0 0.0
        %755 = vmatprep.subr.mxu0 0.0
        %756 = vmatpush1.msra.mxu0 0.0
        %757 = vmatprep.subr.mxu0 0.0
        %758 = vmatpush1.msra.mxu0 0.0
        %759 = vmatprep.subr.mxu0 0.0
        %760 = vmatpush1.msra.mxu0 0.0
        %761 = vmatprep.subr.mxu0 0.0
        %762 = vmatpush1.msra.mxu0 0.0
        %763 = vmatprep.subr.mxu0 0.0
        %764 = vmatpush1.msra.mxu0 0.0
        %765 = vmatprep.subr.mxu0 0.0
        %766 = vmatpush1.msra.mxu0 0.0
        %767 = vmatprep.subr.mxu0 0.0
        %768 = vmatpush1.msra.mxu0 0.0
        %769 = vmatprep.subr.mxu0 0.0
        %770 = vmatpush1.msra.mxu0 0.0
        %771 = vmatprep.subr.mxu0 0.0
        %772 = vmatpush1.msra.mxu0 0.0
        %773 = vmatprep.subr.mxu0 0.0
        %774 = vmatpush1.msra.mxu0 0.0
        %775 = vmatprep.subr.mxu0 0.0
        %776 = vmatpush1.msra.mxu0 0.0
        %777 = vmatprep.subr.mxu0 0.0
        %778 = vmatpush1.msra.mxu0 0.0
        %779 = vmatprep.subr.mxu0 0.0
        %780 = vmatpush1.msra.mxu0 0.0
        %781 = vmatprep.subr.mxu0 0.0
        %782 = vmatpush1.msra.mxu0 0.0
        %783 = vmatprep.subr.mxu0 0.0
        %784 = vmatpush1.msra.mxu0 0.0
        %785 = vmatprep.subr.mxu0 0.0
        %786 = vmatpush1.msra.mxu0 0.0
        %787 = vmatprep.subr.mxu0 0.0
        %788 = vmatpush1.msra.mxu0 0.0
        %789 = vmatprep.subr.mxu0 0.0
        %790 = vmatpush1.msra.mxu0 0.0
        %791 = vmatprep.subr.mxu0 0.0
        %792 = vmatpush1.msra.mxu0 0.0
        %793 = vmatprep.subr.mxu0 0.0
        %794 = vmatpush1.msra.mxu0 0.0
        %795 = vmatprep.subr.mxu0 0.0
        %796 = vmatpush1.msra.mxu0 0.0
        %797 = vmatprep.subr.mxu0 0.0
        %798 = vmatpush1.msra.mxu0 0.0
        %799 = vmatprep.subr.mxu0 0.0
        %800 = vmatpush1.msra.mxu0 0.0
        %801 = vmatprep.subr.mxu0 0.0
        %802 = vmatpush1.msra.mxu0 0.0
        %803 = vmatprep.subr.mxu0 0.0
        %804 = vmatpush1.msra.mxu0 0.0
        %805 = vmatprep.subr.mxu0 0.0
        %806 = vmatpush1.msra.mxu0 0.0
        %807 = vmatprep.subr.mxu0 0.0
        %808 = vmatpush1.msra.mxu0 0.0
        %809 = vmatprep.mubr.f32.mxu0 0.0
        %v810 = vand.u32 %v729, 4294901760
        %v811 = vsub.f32 %v729, %v810
        %v812 = vand.u32 %v811, 4294901760
        %v813 = vsub.f32 %v811, %v812
        %v814 = vand.u32 %v813, 4294901760
        %815 = vmatmul.mubr.f32.gmra.mrb[0].mxu0 %v814
        %v816 = vpop.f32.mrb[0].mxu0
        %v817 = vadd.f32 0.0, %v816
        %v818 = vpop.f32.mrb[0].mxu0
        %819 = vmatprep.mubr.f32.mxu0 0.0
        %v820 = vand.u32 %v732, 4294901760
        %v821 = vsub.f32 %v732, %v820
        %v822 = vand.u32 %v821, 4294901760
        %v823 = vsub.f32 %v821, %v822
        %v824 = vand.u32 %v823, 4294901760
        %825 = vmatmul.mubr.f32.gmra.mrb[0].mxu0 %v824
        %v826 = vpop.f32.mrb[0].mxu0
        %v827 = vadd.f32 0.0, %v826
        %v828 = vpop.f32.mrb[0].mxu0
        %829 = vmatprep.mubr.f32.mxu0 0.0
        %v830 = vand.u32 %v735, 4294901760
        %v831 = vsub.f32 %v735, %v830
        %v832 = vand.u32 %v831, 4294901760
        %v833 = vsub.f32 %v831, %v832
        %v834 = vand.u32 %v833, 4294901760
        %835 = vmatmul.mubr.f32.gmra.mrb[0].mxu0 %v834
        %v836 = vpop.f32.mrb[0].mxu0
        %v837 = vadd.f32 0.0, %v836
        %v838 = vpop.f32.mrb[0].mxu0
        %839 = vmatprep.mubr.f32.mxu0 0.0
        %v840 = vand.u32 %v738, 4294901760
        %v841 = vsub.f32 %v738, %v840
        %v842 = vand.u32 %v841, 4294901760
        %v843 = vsub.f32 %v841, %v842
        %v844 = vand.u32 %v843, 4294901760
        %845 = vmatmul.mubr.f32.gmra.mrb[0].mxu0 %v844
        %v846 = vpop.f32.mrb[0].mxu0
        %v847 = vadd.f32 0.0, %v846
        %v848 = vpop.f32.mrb[0].mxu0
        %849 = vdwg.mxu0
        %850 = vmatprep.subr.mxu0 0.0
        %v851 = vand.u32 %v742, 4294901760
        %v852 = vsub.f32 %v742, %v851
        %v853 = vand.u32 %v852, 4294901760
        %v854 = vsub.f32 %v852, %v853
        %v855 = vand.u32 %v854, 4294901760
        %856 = vmatpush1.msra.mxu0 %v855
        %857 = vmatprep.subr.mxu0 0.0
        %858 = vmatpush1.msra.mxu0 0.0
        %859 = vmatprep.subr.mxu0 0.0
        %860 = vmatpush1.msra.mxu0 0.0
        %861 = vmatprep.subr.mxu0 0.0
        %862 = vmatpush1.msra.mxu0 0.0
        %863 = vmatprep.subr.mxu0 0.0
        %864 = vmatpush1.msra.mxu0 0.0
        %865 = vmatprep.subr.mxu0 0.0
        %866 = vmatpush1.msra.mxu0 0.0
        %867 = vmatprep.subr.mxu0 0.0
        %868 = vmatpush1.msra.mxu0 0.0
        %869 = vmatprep.subr.mxu0 0.0
        %870 = vmatpush1.msra.mxu0 0.0
        %871 = vmatprep.subr.mxu0 0.0
        %872 = vmatpush1.msra.mxu0 0.0
        %873 = vmatprep.subr.mxu0 0.0
        %874 = vmatpush1.msra.mxu0 0.0
        %875 = vmatprep.subr.mxu0 0.0
        %876 = vmatpush1.msra.mxu0 0.0
        %877 = vmatprep.subr.mxu0 0.0
        %878 = vmatpush1.msra.mxu0 0.0
        %879 = vmatprep.subr.mxu0 0.0
        %880 = vmatpush1.msra.mxu0 0.0
        %881 = vmatprep.subr.mxu0 0.0
        %882 = vmatpush1.msra.mxu0 0.0
        %883 = vmatprep.subr.mxu0 0.0
        %884 = vmatpush1.msra.mxu0 0.0
        %885 = vmatprep.subr.mxu0 0.0
        %886 = vmatpush1.msra.mxu0 0.0
        %887 = vmatprep.subr.mxu0 0.0
        %888 = vmatpush1.msra.mxu0 0.0
        %889 = vmatprep.subr.mxu0 0.0
        %890 = vmatpush1.msra.mxu0 0.0
        %891 = vmatprep.subr.mxu0 0.0
        %892 = vmatpush1.msra.mxu0 0.0
        %893 = vmatprep.subr.mxu0 0.0
        %894 = vmatpush1.msra.mxu0 0.0
        %895 = vmatprep.subr.mxu0 0.0
        %896 = vmatpush1.msra.mxu0 0.0
        %897 = vmatprep.subr.mxu0 0.0
        %898 = vmatpush1.msra.mxu0 0.0
        %899 = vmatprep.subr.mxu0 0.0
        %900 = vmatpush1.msra.mxu0 0.0
        %901 = vmatprep.subr.mxu0 0.0
        %902 = vmatpush1.msra.mxu0 0.0
        %903 = vmatprep.subr.mxu0 0.0
        %904 = vmatpush1.msra.mxu0 0.0
        %905 = vmatprep.subr.mxu0 0.0
        %906 = vmatpush1.msra.mxu0 0.0
        %907 = vmatprep.subr.mxu0 0.0
        %908 = vmatpush1.msra.mxu0 0.0
        %909 = vmatprep.subr.mxu0 0.0
        %910 = vmatpush1.msra.mxu0 0.0
        %911 = vmatprep.subr.mxu0 0.0
        %912 = vmatpush1.msra.mxu0 0.0
        %913 = vmatprep.subr.mxu0 0.0
        %914 = vmatpush1.msra.mxu0 0.0
        %915 = vmatprep.subr.mxu0 0.0
        %916 = vmatpush1.msra.mxu0 0.0
        %917 = vmatprep.subr.mxu0 0.0
        %918 = vmatpush1.msra.mxu0 0.0
        %919 = vmatprep.mubr.f32.mxu0 0.0
        %v920 = vand.u32 %v729, 4294901760
        %921 = vmatmul.mubr.f32.gmra.mrb[0].mxu0 %v920
        %v922 = vpop.f32.mrb[0].mxu0
        %v923 = vadd.f32 %v817, %v922
        %v924 = vpop.f32.mrb[0].mxu0
        %925 = vmatprep.mubr.f32.mxu0 0.0
        %v926 = vand.u32 %v732, 4294901760
        %927 = vmatmul.mubr.f32.gmra.mrb[0].mxu0 %v926
        %v928 = vpop.f32.mrb[0].mxu0
        %v929 = vadd.f32 %v827, %v928
        %v930 = vpop.f32.mrb[0].mxu0
        %931 = vmatprep.mubr.f32.mxu0 0.0
        %v932 = vand.u32 %v735, 4294901760
        %933 = vmatmul.mubr.f32.gmra.mrb[0].mxu0 %v932
        %v934 = vpop.f32.mrb[0].mxu0
        %v935 = vadd.f32 %v837, %v934
        %v936 = vpop.f32.mrb[0].mxu0
        %937 = vmatprep.mubr.f32.mxu0 0.0
        %v938 = vand.u32 %v738, 4294901760
        %939 = vmatmul.mubr.f32.gmra.mrb[0].mxu0 %v938
        %v940 = vpop.f32.mrb[0].mxu0
        %v941 = vadd.f32 %v847, %v940
        %v942 = vpop.f32.mrb[0].mxu0
        %943 = vdwg.mxu0
        %944 = vmatprep.subr.mxu0 0.0
        %v945 = vand.u32 %v742, 4294901760
        %v946 = vsub.f32 %v742, %v945
        %947 = vmatpush1.msra.mxu0 %v946
        %948 = vmatprep.subr.mxu0 0.0
        %949 = vmatpush1.msra.mxu0 0.0
        %950 = vmatprep.subr.mxu0 0.0
        %951 = vmatpush1.msra.mxu0 0.0
        %952 = vmatprep.subr.mxu0 0.0
        %953 = vmatpush1.msra.mxu0 0.0
        %954 = vmatprep.subr.mxu0 0.0
        %955 = vmatpush1.msra.mxu0 0.0
        %956 = vmatprep.subr.mxu0 0.0
        %957 = vmatpush1.msra.mxu0 0.0
        %958 = vmatprep.subr.mxu0 0.0
        %959 = vmatpush1.msra.mxu0 0.0
        %960 = vmatprep.subr.mxu0 0.0
        %961 = vmatpush1.msra.mxu0 0.0
        %962 = vmatprep.subr.mxu0 0.0
        %963 = vmatpush1.msra.mxu0 0.0
        %964 = vmatprep.subr.mxu0 0.0
        %965 = vmatpush1.msra.mxu0 0.0
        %966 = vmatprep.subr.mxu0 0.0
        %967 = vmatpush1.msra.mxu0 0.0
        %968 = vmatprep.subr.mxu0 0.0
        %969 = vmatpush1.msra.mxu0 0.0
        %970 = vmatprep.subr.mxu0 0.0
        %971 = vmatpush1.msra.mxu0 0.0
        %972 = vmatprep.subr.mxu0 0.0
        %973 = vmatpush1.msra.mxu0 0.0
        %974 = vmatprep.subr.mxu0 0.0
        %975 = vmatpush1.msra.mxu0 0.0
        %976 = vmatprep.subr.mxu0 0.0
        %977 = vmatpush1.msra.mxu0 0.0
        %978 = vmatprep.subr.mxu0 0.0
        %979 = vmatpush1.msra.mxu0 0.0
        %980 = vmatprep.subr.mxu0 0.0
        %981 = vmatpush1.msra.mxu0 0.0
        %982 = vmatprep.subr.mxu0 0.0
        %983 = vmatpush1.msra.mxu0 0.0
        %984 = vmatprep.subr.mxu0 0.0
        %985 = vmatpush1.msra.mxu0 0.0
        %986 = vmatprep.subr.mxu0 0.0
        %987 = vmatpush1.msra.mxu0 0.0
        %988 = vmatprep.subr.mxu0 0.0
        %989 = vmatpush1.msra.mxu0 0.0
        %990 = vmatprep.subr.mxu0 0.0
        %991 = vmatpush1.msra.mxu0 0.0
        %992 = vmatprep.subr.mxu0 0.0
        %993 = vmatpush1.msra.mxu0 0.0
        %994 = vmatprep.subr.mxu0 0.0
        %995 = vmatpush1.msra.mxu0 0.0
        %996 = vmatprep.subr.mxu0 0.0
        %997 = vmatpush1.msra.mxu0 0.0
        %998 = vmatprep.subr.mxu0 0.0
        %999 = vmatpush1.msra.mxu0 0.0
        %1000 = vmatprep.subr.mxu0 0.0
        %1001 = vmatpush1.msra.mxu0 0.0
        %1002 = vmatprep.subr.mxu0 0.0
        %1003 = vmatpush1.msra.mxu0 0.0
        %1004 = vmatprep.subr.mxu0 0.0
        %1005 = vmatpush1.msra.mxu0 0.0
        %1006 = vmatprep.subr.mxu0 0.0
        %1007 = vmatpush1.msra.mxu0 0.0
        %1008 = vmatprep.subr.mxu0 0.0
        %1009 = vmatpush1.msra.mxu0 0.0
        %1010 = vmatprep.mubr.f32.mxu0 0.0
        %v1011 = vand.u32 %v729, 4294901760
        %v1012 = vsub.f32 %v729, %v1011
        %1013 = vmatmul.mubr.f32.gmra.mrb[0].mxu0 %v1012
        %v1014 = vpop.f32.mrb[0].mxu0
        %v1015 = vadd.f32 %v923, %v1014
        %v1016 = vpop.f32.mrb[0].mxu0
        %1017 = vmatprep.mubr.f32.mxu0 0.0
        %v1018 = vand.u32 %v732, 4294901760
        %v1019 = vsub.f32 %v732, %v1018
        %1020 = vmatmul.mubr.f32.gmra.mrb[0].mxu0 %v1019
        %v1021 = vpop.f32.mrb[0].mxu0
        %v1022 = vadd.f32 %v929, %v1021
        %v1023 = vpop.f32.mrb[0].mxu0
        %1024 = vmatprep.mubr.f32.mxu0 0.0
        %v1025 = vand.u32 %v735, 4294901760
        %v1026 = vsub.f32 %v735, %v1025
        %1027 = vmatmul.mubr.f32.gmra.mrb[0].mxu0 %v1026
        %v1028 = vpop.f32.mrb[0].mxu0
        %v1029 = vadd.f32 %v935, %v1028
        %v1030 = vpop.f32.mrb[0].mxu0
        %1031 = vmatprep.mubr.f32.mxu0 0.0
        %v1032 = vand.u32 %v738, 4294901760
        %v1033 = vsub.f32 %v738, %v1032
        %1034 = vmatmul.mubr.f32.gmra.mrb[0].mxu0 %v1033
        %v1035 = vpop.f32.mrb[0].mxu0
        %v1036 = vadd.f32 %v941, %v1035
        %v1037 = vpop.f32.mrb[0].mxu0
        %1038 = vdwg.mxu0
        %1039 = vmatprep.subr.mxu0 0.0
        %v1040 = vand.u32 %v742, 4294901760
        %1041 = vmatpush1.msra.mxu0 %v1040
        %1042 = vmatprep.subr.mxu0 0.0
        %1043 = vmatpush1.msra.mxu0 0.0
        %1044 = vmatprep.subr.mxu0 0.0
        %1045 = vmatpush1.msra.mxu0 0.0
        %1046 = vmatprep.subr.mxu0 0.0
        %1047 = vmatpush1.msra.mxu0 0.0
        %1048 = vmatprep.subr.mxu0 0.0
        %1049 = vmatpush1.msra.mxu0 0.0
        %1050 = vmatprep.subr.mxu0 0.0
        %1051 = vmatpush1.msra.mxu0 0.0
        %1052 = vmatprep.subr.mxu0 0.0
        %1053 = vmatpush1.msra.mxu0 0.0
        %1054 = vmatprep.subr.mxu0 0.0
        %1055 = vmatpush1.msra.mxu0 0.0
        %1056 = vmatprep.subr.mxu0 0.0
        %1057 = vmatpush1.msra.mxu0 0.0
        %1058 = vmatprep.subr.mxu0 0.0
        %1059 = vmatpush1.msra.mxu0 0.0
        %1060 = vmatprep.subr.mxu0 0.0
        %1061 = vmatpush1.msra.mxu0 0.0
        %1062 = vmatprep.subr.mxu0 0.0
        %1063 = vmatpush1.msra.mxu0 0.0
        %1064 = vmatprep.subr.mxu0 0.0
        %1065 = vmatpush1.msra.mxu0 0.0
        %1066 = vmatprep.subr.mxu0 0.0
        %1067 = vmatpush1.msra.mxu0 0.0
        %1068 = vmatprep.subr.mxu0 0.0
        %1069 = vmatpush1.msra.mxu0 0.0
        %1070 = vmatprep.subr.mxu0 0.0
        %1071 = vmatpush1.msra.mxu0 0.0
        %1072 = vmatprep.subr.mxu0 0.0
        %1073 = vmatpush1.msra.mxu0 0.0
        %1074 = vmatprep.subr.mxu0 0.0
        %1075 = vmatpush1.msra.mxu0 0.0
        %1076 = vmatprep.subr.mxu0 0.0
        %1077 = vmatpush1.msra.mxu0 0.0
        %1078 = vmatprep.subr.mxu0 0.0
        %1079 = vmatpush1.msra.mxu0 0.0
        %1080 = vmatprep.subr.mxu0 0.0
        %1081 = vmatpush1.msra.mxu0 0.0
        %1082 = vmatprep.subr.mxu0 0.0
        %1083 = vmatpush1.msra.mxu0 0.0
        %1084 = vmatprep.subr.mxu0 0.0
        %1085 = vmatpush1.msra.mxu0 0.0
        %1086 = vmatprep.subr.mxu0 0.0
        %1087 = vmatpush1.msra.mxu0 0.0
        %1088 = vmatprep.subr.mxu0 0.0
        %1089 = vmatpush1.msra.mxu0 0.0
        %1090 = vmatprep.subr.mxu0 0.0
        %1091 = vmatpush1.msra.mxu0 0.0
        %1092 = vmatprep.subr.mxu0 0.0
        %1093 = vmatpush1.msra.mxu0 0.0
        %1094 = vmatprep.subr.mxu0 0.0
        %1095 = vmatpush1.msra.mxu0 0.0
        %1096 = vmatprep.subr.mxu0 0.0
        %1097 = vmatpush1.msra.mxu0 0.0
        %1098 = vmatprep.subr.mxu0 0.0
        %1099 = vmatpush1.msra.mxu0 0.0
        %1100 = vmatprep.subr.mxu0 0.0
        %1101 = vmatpush1.msra.mxu0 0.0
        %1102 = vmatprep.subr.mxu0 0.0
        %1103 = vmatpush1.msra.mxu0 0.0
        %1104 = vmatprep.mubr.f32.mxu0 0.0
        %v1105 = vand.u32 %v729, 4294901760
        %v1106 = vsub.f32 %v729, %v1105
        %v1107 = vand.u32 %v1106, 4294901760
        %1108 = vmatmul.mubr.f32.gmra.mrb[0].mxu0 %v1107
        %v1109 = vpop.f32.mrb[0].mxu0
        %v1110 = vadd.f32 %v1015, %v1109
        %v1111 = vpop.f32.mrb[0].mxu0
        %1112 = vmatprep.mubr.f32.mxu0 0.0
        %v1113 = vand.u32 %v732, 4294901760
        %v1114 = vsub.f32 %v732, %v1113
        %v1115 = vand.u32 %v1114, 4294901760
        %1116 = vmatmul.mubr.f32.gmra.mrb[0].mxu0 %v1115
        %v1117 = vpop.f32.mrb[0].mxu0
        %v1118 = vadd.f32 %v1022, %v1117
        %v1119 = vpop.f32.mrb[0].mxu0
        %1120 = vmatprep.mubr.f32.mxu0 0.0
        %v1121 = vand.u32 %v735, 4294901760
        %v1122 = vsub.f32 %v735, %v1121
        %v1123 = vand.u32 %v1122, 4294901760
        %1124 = vmatmul.mubr.f32.gmra.mrb[0].mxu0 %v1123
        %v1125 = vpop.f32.mrb[0].mxu0
        %v1126 = vadd.f32 %v1029, %v1125
        %v1127 = vpop.f32.mrb[0].mxu0
        %1128 = vmatprep.mubr.f32.mxu0 0.0
        %v1129 = vand.u32 %v738, 4294901760
        %v1130 = vsub.f32 %v738, %v1129
        %v1131 = vand.u32 %v1130, 4294901760
        %1132 = vmatmul.mubr.f32.gmra.mrb[0].mxu0 %v1131
        %v1133 = vpop.f32.mrb[0].mxu0
        %v1134 = vadd.f32 %v1036, %v1133
        %v1135 = vpop.f32.mrb[0].mxu0
        %1136 = vdwg.mxu0
        %1137 = vmatprep.subr.mxu0 0.0
        %v1138 = vand.u32 %v742, 4294901760
        %v1139 = vsub.f32 %v742, %v1138
        %v1140 = vand.u32 %v1139, 4294901760
        %1141 = vmatpush1.msra.mxu0 %v1140
        %1142 = vmatprep.subr.mxu0 0.0
        %1143 = vmatpush1.msra.mxu0 0.0
        %1144 = vmatprep.subr.mxu0 0.0
        %1145 = vmatpush1.msra.mxu0 0.0
        %1146 = vmatprep.subr.mxu0 0.0
        %1147 = vmatpush1.msra.mxu0 0.0
        %1148 = vmatprep.subr.mxu0 0.0
        %1149 = vmatpush1.msra.mxu0 0.0
        %1150 = vmatprep.subr.mxu0 0.0
        %1151 = vmatpush1.msra.mxu0 0.0
        %1152 = vmatprep.subr.mxu0 0.0
        %1153 = vmatpush1.msra.mxu0 0.0
        %1154 = vmatprep.subr.mxu0 0.0
        %1155 = vmatpush1.msra.mxu0 0.0
        %1156 = vmatprep.subr.mxu0 0.0
        %1157 = vmatpush1.msra.mxu0 0.0
        %1158 = vmatprep.subr.mxu0 0.0
        %1159 = vmatpush1.msra.mxu0 0.0
        %1160 = vmatprep.subr.mxu0 0.0
        %1161 = vmatpush1.msra.mxu0 0.0
        %1162 = vmatprep.subr.mxu0 0.0
        %1163 = vmatpush1.msra.mxu0 0.0
        %1164 = vmatprep.subr.mxu0 0.0
        %1165 = vmatpush1.msra.mxu0 0.0
        %1166 = vmatprep.subr.mxu0 0.0
        %1167 = vmatpush1.msra.mxu0 0.0
        %1168 = vmatprep.subr.mxu0 0.0
        %1169 = vmatpush1.msra.mxu0 0.0
        %1170 = vmatprep.subr.mxu0 0.0
        %1171 = vmatpush1.msra.mxu0 0.0
        %1172 = vmatprep.subr.mxu0 0.0
        %1173 = vmatpush1.msra.mxu0 0.0
        %1174 = vmatprep.subr.mxu0 0.0
        %1175 = vmatpush1.msra.mxu0 0.0
        %1176 = vmatprep.subr.mxu0 0.0
        %1177 = vmatpush1.msra.mxu0 0.0
        %1178 = vmatprep.subr.mxu0 0.0
        %1179 = vmatpush1.msra.mxu0 0.0
        %1180 = vmatprep.subr.mxu0 0.0
        %1181 = vmatpush1.msra.mxu0 0.0
        %1182 = vmatprep.subr.mxu0 0.0
        %1183 = vmatpush1.msra.mxu0 0.0
        %1184 = vmatprep.subr.mxu0 0.0
        %1185 = vmatpush1.msra.mxu0 0.0
        %1186 = vmatprep.subr.mxu0 0.0
        %1187 = vmatpush1.msra.mxu0 0.0
        %1188 = vmatprep.subr.mxu0 0.0
        %1189 = vmatpush1.msra.mxu0 0.0
        %1190 = vmatprep.subr.mxu0 0.0
        %1191 = vmatpush1.msra.mxu0 0.0
        %1192 = vmatprep.subr.mxu0 0.0
        %1193 = vmatpush1.msra.mxu0 0.0
        %1194 = vmatprep.subr.mxu0 0.0
        %1195 = vmatpush1.msra.mxu0 0.0
        %1196 = vmatprep.subr.mxu0 0.0
        %1197 = vmatpush1.msra.mxu0 0.0
        %1198 = vmatprep.subr.mxu0 0.0
        %1199 = vmatpush1.msra.mxu0 0.0
        %1200 = vmatprep.subr.mxu0 0.0
        %1201 = vmatpush1.msra.mxu0 0.0
        %1202 = vmatprep.subr.mxu0 0.0
        %1203 = vmatpush1.msra.mxu0 0.0
        %1204 = vmatprep.mubr.f32.mxu0 0.0
        %v1205 = vand.u32 %v729, 4294901760
        %1206 = vmatmul.mubr.f32.gmra.mrb[0].mxu0 %v1205
        %v1207 = vpop.f32.mrb[0].mxu0
        %v1208 = vadd.f32 %v1110, %v1207
        %v1209 = vpop.f32.mrb[0].mxu0
        %1210 = vmatprep.mubr.f32.mxu0 0.0
        %v1211 = vand.u32 %v732, 4294901760
        %1212 = vmatmul.mubr.f32.gmra.mrb[0].mxu0 %v1211
        %v1213 = vpop.f32.mrb[0].mxu0
        %v1214 = vadd.f32 %v1118, %v1213
        %v1215 = vpop.f32.mrb[0].mxu0
        %1216 = vmatprep.mubr.f32.mxu0 0.0
        %v1217 = vand.u32 %v735, 4294901760
        %1218 = vmatmul.mubr.f32.gmra.mrb[0].mxu0 %v1217
        %v1219 = vpop.f32.mrb[0].mxu0
        %v1220 = vadd.f32 %v1126, %v1219
        %v1221 = vpop.f32.mrb[0].mxu0
        %1222 = vmatprep.mubr.f32.mxu0 0.0
        %v1223 = vand.u32 %v738, 4294901760
        %1224 = vmatmul.mubr.f32.gmra.mrb[0].mxu0 %v1223
        %v1225 = vpop.f32.mrb[0].mxu0
        %v1226 = vadd.f32 %v1134, %v1225
        %v1227 = vpop.f32.mrb[0].mxu0
        %1228 = vdwg.mxu0
        %1229 = vmatprep.subr.mxu0 0.0
        %v1230 = vand.u32 %v742, 4294901760
        %1231 = vmatpush1.msra.mxu0 %v1230
        %1232 = vmatprep.subr.mxu0 0.0
        %1233 = vmatpush1.msra.mxu0 0.0
        %1234 = vmatprep.subr.mxu0 0.0
        %1235 = vmatpush1.msra.mxu0 0.0
        %1236 = vmatprep.subr.mxu0 0.0
        %1237 = vmatpush1.msra.mxu0 0.0
        %1238 = vmatprep.subr.mxu0 0.0
        %1239 = vmatpush1.msra.mxu0 0.0
        %1240 = vmatprep.subr.mxu0 0.0
        %1241 = vmatpush1.msra.mxu0 0.0
        %1242 = vmatprep.subr.mxu0 0.0
        %1243 = vmatpush1.msra.mxu0 0.0
        %1244 = vmatprep.subr.mxu0 0.0
        %1245 = vmatpush1.msra.mxu0 0.0
        %1246 = vmatprep.subr.mxu0 0.0
        %1247 = vmatpush1.msra.mxu0 0.0
        %1248 = vmatprep.subr.mxu0 0.0
        %1249 = vmatpush1.msra.mxu0 0.0
        %1250 = vmatprep.subr.mxu0 0.0
        %1251 = vmatpush1.msra.mxu0 0.0
        %1252 = vmatprep.subr.mxu0 0.0
        %1253 = vmatpush1.msra.mxu0 0.0
        %1254 = vmatprep.subr.mxu0 0.0
        %1255 = vmatpush1.msra.mxu0 0.0
        %1256 = vmatprep.subr.mxu0 0.0
        %1257 = vmatpush1.msra.mxu0 0.0
        %1258 = vmatprep.subr.mxu0 0.0
        %1259 = vmatpush1.msra.mxu0 0.0
        %1260 = vmatprep.subr.mxu0 0.0
        %1261 = vmatpush1.msra.mxu0 0.0
        %1262 = vmatprep.subr.mxu0 0.0
        %1263 = vmatpush1.msra.mxu0 0.0
        %1264 = vmatprep.subr.mxu0 0.0
        %1265 = vmatpush1.msra.mxu0 0.0
        %1266 = vmatprep.subr.mxu0 0.0
        %1267 = vmatpush1.msra.mxu0 0.0
        %1268 = vmatprep.subr.mxu0 0.0
        %1269 = vmatpush1.msra.mxu0 0.0
        %1270 = vmatprep.subr.mxu0 0.0
        %1271 = vmatpush1.msra.mxu0 0.0
        %1272 = vmatprep.subr.mxu0 0.0
        %1273 = vmatpush1.msra.mxu0 0.0
        %1274 = vmatprep.subr.mxu0 0.0
        %1275 = vmatpush1.msra.mxu0 0.0
        %1276 = vmatprep.subr.mxu0 0.0
        %1277 = vmatpush1.msra.mxu0 0.0
        %1278 = vmatprep.subr.mxu0 0.0
        %1279 = vmatpush1.msra.mxu0 0.0
        %1280 = vmatprep.subr.mxu0 0.0
        %1281 = vmatpush1.msra.mxu0 0.0
        %1282 = vmatprep.subr.mxu0 0.0
        %1283 = vmatpush1.msra.mxu0 0.0
        %1284 = vmatprep.subr.mxu0 0.0
        %1285 = vmatpush1.msra.mxu0 0.0
        %1286 = vmatprep.subr.mxu0 0.0
        %1287 = vmatpush1.msra.mxu0 0.0
        %1288 = vmatprep.subr.mxu0 0.0
        %1289 = vmatpush1.msra.mxu0 0.0
        %1290 = vmatprep.subr.mxu0 0.0
        %1291 = vmatpush1.msra.mxu0 0.0
        %1292 = vmatprep.subr.mxu0 0.0
        %1293 = vmatpush1.msra.mxu0 0.0
        %1294 = vmatprep.mubr.f32.mxu0 0.0
        %v1295 = vand.u32 %v729, 4294901760
        %1296 = vmatmul.mubr.f32.gmra.mrb[0].mxu0 %v1295
        %v1297 = vpop.f32.mrb[0].mxu0
        %v1298 = vadd.f32 %v1208, %v1297
        %v1299 = vpop.f32.mrb[0].mxu0
        %1300 = vmatprep.mubr.f32.mxu0 0.0
        %v1301 = vand.u32 %v732, 4294901760
        %1302 = vmatmul.mubr.f32.gmra.mrb[0].mxu0 %v1301
        %v1303 = vpop.f32.mrb[0].mxu0
        %v1304 = vadd.f32 %v1214, %v1303
        %v1305 = vpop.f32.mrb[0].mxu0
        %1306 = vmatprep.mubr.f32.mxu0 0.0
        %v1307 = vand.u32 %v735, 4294901760
        %1308 = vmatmul.mubr.f32.gmra.mrb[0].mxu0 %v1307
        %v1309 = vpop.f32.mrb[0].mxu0
        %v1310 = vadd.f32 %v1220, %v1309
        %v1311 = vpop.f32.mrb[0].mxu0
        %1312 = vmatprep.mubr.f32.mxu0 0.0
        %v1313 = vand.u32 %v738, 4294901760
        %1314 = vmatmul.mubr.f32.gmra.mrb[0].mxu0 %v1313
        %v1315 = vpop.f32.mrb[0].mxu0
        %v1316 = vadd.f32 %v1226, %v1315
        %v1317 = vpop.f32.mrb[0].mxu0
        %1318 = vdwg.mxu0
        %vm1319 = vcmask 15360
        %v1320 = vsel %vm1319, %v1298, 0.0
        %1321 = vadd.xlane.f32.xlu0 %v1320
        %v1322 = vpop.xlane.xlu0 %1321
        %v1323 = vsel %vm1319, %v1304, 0.0
        %1324 = vadd.xlane.f32.xlu0 %v1323
        %v1325 = vpop.xlane.xlu0 %1324
        %v1326 = vsel %vm1319, %v1310, 0.0
        %1327 = vadd.xlane.f32.xlu0 %v1326
        %v1328 = vpop.xlane.xlu0 %1327
        %v1329 = vsel %vm1319, %v1316, 0.0
        %1330 = vadd.xlane.f32.xlu0 %v1329
        %v1331 = vpop.xlane.xlu0 %1330
        %v1332 = vsub.f32 0.0, %v1322
        %v1333 = vsub.f32 0.0, %v1325
        %v1334 = vsub.f32 0.0, %v1328
        %v1335 = vsub.f32 0.0, %v1331
        %v1336 = vmul.f32 %v1332, 1.442695
        %v1337 = vpow.pop %v1336
        %v1338 = vmul.f32 %v1333, 1.442695
        %v1339 = vpow.pop %v1338
        %v1340 = vmul.f32 %v1334, 1.442695
        %v1341 = vpow.pop %v1340
        %v1342 = vmul.f32 %v1335, 1.442695
        %v1343 = vpow.pop %v1342
        %v1344 = vadd.f32 %v1337, 1.0
        %v1345 = vadd.f32 %v1339, 1.0
        %v1346 = vadd.f32 %v1341, 1.0
        %v1347 = vadd.f32 %v1343, 1.0
        %v1348 = vrcp.pop %v1344
        %v1349 = vmul.f32 1.0, %v1348
        %v1350 = vrcp.pop %v1345
        %v1351 = vmul.f32 1.0, %v1350
        %v1352 = vrcp.pop %v1346
        %v1353 = vmul.f32 1.0, %v1352
        %v1354 = vrcp.pop %v1347
        %v1355 = vmul.f32 1.0, %v1354
        %v1356 = vmul.f32 %v189, %v1349
        %v1357 = vmul.f32 %v190, %v1349
        %v1358 = vmul.f32 %v191, %v1351
        %v1359 = vmul.f32 %v192, %v1351
        %v1360 = vmul.f32 %v193, %v1353
        %v1361 = vmul.f32 %v194, %v1353
        %v1362 = vmul.f32 %v195, %v1355
        %v1363 = vmul.f32 %v196, %v1355
        %1364 = vst [vmem:[%s188] sm:$0xff] %v1356
        %1365 = vst [vmem:[%s188 + $0x8] sm:$0xff] %v1357
        %1366 = vst [vmem:[%s188 + $0x10] sm:$0xff] %v1358
        %1367 = vst [vmem:[%s188 + $0x18] sm:$0xff] %v1359
        %1368 = vst [vmem:[%s188 + $0x20] sm:$0xff] %v1360
        %1369 = vst [vmem:[%s188 + $0x28] sm:$0xff] %v1361
        %1370 = vst [vmem:[%s188 + $0x30] sm:$0xff] %v1362
        %1371 = vst [vmem:[%s188 + $0x38] sm:$0xff] %v1363
        %s1372 = sand.u32 %s96, 1
        %s1373 = scalar_lea.sflag [#allocation4], %s1372
        %s1374 = sand.u32 %s96, 1
        %s1375 = smul.addr %s1374, 64
        %s1376 = scalar_lea.vmem [#allocation5], %s1375
        // Predicated region
        $region37: #{tpu_custom_call.1} parent=31 // pred_check
          %p1377 = pneg %p106
        $region38: #{tpu_custom_call.1} parent=31 // pred_check_branch
          %1379 = sbr.rel (%p1377) target = $region40
        $region39: #{tpu_custom_call.1} parent=31 // pred_region
          %s1381 = ssub.s32 1024, 1024
          %1382 = vsyncadd %s1373, %s1381
          %s1383 = smul.addr %s20, 8
          %s1384 = smul.addr %s1383, 128
          %s1385 = scalar_lea.hbm %s3, %s1384
          %s1386 = sshll.u32 %s1376, 4
          %s1387 = int_to_ptr.vmem [resolvable:$true] %s1386
          %1392 = dma.vmem_to_hbm [thread:$0]  %s1387, 1024, %s1385, %s1373, 256, 256, 16
        $region40: #{tpu_custom_call.1} parent=31 // pred_fallthru
          _
      $region32: #{tpu_custom_call.1} parent=5 // pred_fallthru
        _
      %p1393 = scmp.le.s32.totalorder 2, %s15
      // Predicated region
      $region41: #{tpu_custom_call.1} parent=5 // pred_check
        %p1394 = pneg %p1393
      $region42: #{tpu_custom_call.1} parent=5 // pred_check_branch
        %1396 = sbr.rel (%p1394) target = $region44
      $region43: #{tpu_custom_call.1} parent=5 // pred_region
        %s1397 = ssub.s32 %s15, 2
        // Predicated region
        $region45: #{tpu_custom_call.1} parent=43 // pred_check
          %p1398 = pneg %p112
        $region46: #{tpu_custom_call.1} parent=43 // pred_check_branch
          %1400 = sbr.rel (%p1398) target = $region48
        $region47: #{tpu_custom_call.1} parent=43 // pred_region
          %s1401 = sand.u32 %s97, 1
          %s1402 = scalar_lea.sflag [#allocation4], %s1401
          %s1403 = sand.u32 %s97, 1
          %s1404 = smul.addr %s1403, 64
          %s1405 = scalar_lea.vmem [#allocation5], %s1404
          %1406 = dma.done %s1402, 1024
        $region48: #{tpu_custom_call.1} parent=43 // pred_fallthru
          _
      $region44: #{tpu_custom_call.1} parent=5 // pred_fallthru
        _
    $region6: #{tpu_custom_call.1} parent=1 // loop_footer
      %s19 = sadd.s32 1, %s15
    $region7: #{tpu_custom_call.1} parent=1 // loop_footer_branch
      %14 = sbr.rel target = $region3
    $region8: #{tpu_custom_call.1} parent=1 // loop_exit
      _
    %1407 = vsyncpa [#allocation3], 1
    %s1408 = scalar_lea.sflag [#allocation3], 1
    %1409 = vsyncpa %s1408, 1
    %1410 = vsyncpa [#allocation4], 1
    %s1411 = scalar_lea.sflag [#allocation4], 1
    %1412 = vsyncpa %s1411, 1

</llo_original>
